<compile_context>
chip_gen: v7x
topology: tpu7x:2x2x1
jax: 0.10.0
libtpu: 0.0.40
codegen_flags: <defaults>
</compile_context>

<pallas_src>
import functools

import numpy as np
import jax
import jax.numpy as jnp
from jax.experimental import pallas as pl
from jax.experimental.pallas import tpu as pltpu

HID = 200        # nn = 200 in the module
FC1 = 100
NCLS = 6
BN_EPS = 1e-5
NEG_INF = -1e30


def _round_up(v, m):
    return ((v + m - 1) // m) * m


# ---------------------------------------------------------------------------
# Fused kernel: GCNConv1+ReLU+BN1 -> GCNConv2+ReLU+BN2 -> mean/max pool ->
#               fc1+ReLU -> fc2 -> log_softmax.   Invoked once (no grid).
# ---------------------------------------------------------------------------
def fused_gcn_kernel(n_graphs, max_seg, n_pad,
                     offs_ref, cnts_ref,                       # SMEM [B] int32
                     a_ref, x_ref, w1_ref, w2_ref,             # VMEM, bf16
                     aff1_ref, aff2_ref,                       # VMEM, f32 [8, Hp]
                     p_ref,                                    # VMEM, f32 [Bp, Np]
                     w1a_ref, w1b_ref, bfc1_ref, wfc2_ref, bfc2_ref,  # head, f32
                     o_ref,                                    # VMEM out [Bp, 128]
                     h_scr, pool_scr):                         # VMEM scratch
    f32 = jnp.float32
    bf16 = jnp.bfloat16
    a = a_ref[...]                                             # [Np, Np] bf16

    # ---- layer 1: propagate first (F << H), then transform; BN folded affine.
    ax = jnp.dot(a, x_ref[...], preferred_element_type=f32)              # [Np, Fp]
    h = jnp.dot(ax.astype(bf16), w1_ref[...], preferred_element_type=f32)  # [Np, Hp]
    h = jnp.maximum(h + aff1_ref[0:1, :], 0.0)                 # + bias, ReLU
    h = h * aff1_ref[1:2, :] + aff1_ref[2:3, :]                # BN (eval) as affine

    # ---- layer 2: transform then propagate (H == H).
    hw = jnp.dot(h.astype(bf16), w2_ref[...], preferred_element_type=f32)
    h2 = jnp.dot(a, hw.astype(bf16), preferred_element_type=f32)
    h2 = jnp.maximum(h2 + aff2_ref[0:1, :], 0.0)
    h2 = h2 * aff2_ref[1:2, :] + aff2_ref[2:3, :]              # [Np, Hp] f32

    # ---- mean pool as one MXU matmul: P[b, n] = 1/cnt[b]  (0 for pad rows).
    mean_pool = jnp.dot(p_ref[...], h2, preferred_element_type=f32)      # [Bp, Hp]

    # ---- segmented max pool over 8-aligned per-graph node windows.
    # Rows >= n_pad of h_scr stay uninitialized; they are always masked out by
    # `row < cnt` below (jnp.where is a select, so garbage never propagates).
    h_scr[pl.ds(0, n_pad), :] = h2
    pool_scr[...] = jnp.zeros_like(pool_scr)
    row_ids = jax.lax.broadcasted_iota(jnp.int32, (max_seg, 1), 0)
    for b in range(n_graphs):                                  # B is small & static
        off = pl.multiple_of(offs_ref[b], 8)                   # sublane-aligned start
        cnt = cnts_ref[b]
        blk = h_scr[pl.ds(off, max_seg), :]                    # [max_seg, Hp]
        valid = row_ids < cnt                                  # masks pads + garbage
        pool_scr[pl.ds(b, 1), :] = jnp.max(
            jnp.where(valid, blk, NEG_INF), axis=0, keepdims=True)

    # ---- fc1 on cat([mean, max]) == mean @ W1a + max @ W1b, then ReLU.
    g1 = (jnp.dot(mean_pool, w1a_ref[...], preferred_element_type=f32)
          + jnp.dot(pool_scr[...], w1b_ref[...], preferred_element_type=f32)
          + bfc1_ref[...])
    g1 = jnp.maximum(g1, 0.0)

    # ---- fc2 + log_softmax (padded class lanes carry a -1e30 bias -> exp == 0).
    z = jnp.dot(g1, wfc2_ref[...], preferred_element_type=f32) + bfc2_ref[...]
    zmax = jnp.max(z, axis=1, keepdims=True)
    zs = z - zmax
    lse = jnp.log(jnp.sum(jnp.exp(zs), axis=1, keepdims=True))
    o_ref[...] = zs - lse


# ---------------------------------------------------------------------------
# Wrapper: host-side segmentation, padding, BN folding, single pallas_call.
# ---------------------------------------------------------------------------
def gcn_net_forward(x, edge_index, batch, params):
    x = jnp.asarray(x, jnp.float32)
    edge_index = jnp.asarray(edge_index, jnp.int32)
    n, f = x.shape

    # --- host-side batch segmentation (static shapes, one transfer of `batch`).
    batch_np = np.asarray(batch).astype(np.int64)
    num_graphs = int(batch_np.max()) + 1
    cnts_np = np.bincount(batch_np, minlength=num_graphs).astype(np.int64)
    seg_sizes = np.maximum(((cnts_np + 7) // 8) * 8, 8)        # 8-aligned segments
    seg_offs = (np.cumsum(seg_sizes) - seg_sizes).astype(np.int64)
    n_pad = int(seg_sizes.sum())
    max_seg = int(seg_sizes.max())
    b_pad = _round_up(num_graphs, 8)
    f_pad = _round_up(f, 128)
    hp = _round_up(HID, 128)       # 256: lane-dense hidden dim
    fc1p = _round_up(FC1, 128)     # 128
    out_pad = 128                  # lane-dense logits tile

    # Permutation old-node -> padded slot so each graph's rows start 8-aligned
    # (works for unsorted `batch` too).
    order = np.argsort(batch_np, kind="stable")
    starts_sorted = np.cumsum(cnts_np) - cnts_np
    rank = np.empty(n, np.int64)
    rank[order] = np.arange(n) - starts_sorted[batch_np[order]]
    perm = jnp.asarray((seg_offs[batch_np] + rank).astype(np.int32))

    # --- padded + permuted node features (bf16 for the MXU).
    x_cols = jnp.zeros((n, f_pad), jnp.float32).at[:, :f].set(x)
    x_p = jnp.zeros((n_pad, f_pad), jnp.float32).at[perm].set(x_cols)
    x_p = x_p.astype(jnp.bfloat16)

    # --- padded + permuted normalized adjacency with self loops (bf16).
    src = perm[edge_index[0]]
    dst = perm[edge_index[1]]
    a = jnp.zeros((n_pad, n_pad), jnp.float32).at[src, dst].set(1.0)
    a = a.at[perm, perm].add(1.0)                 # self loops on real nodes only
    deg = jnp.sum(a, axis=1)
    dinv = jnp.where(deg > 0, 1.0 / jnp.sqrt(deg), 0.0)
    a_p = (dinv[:, None] * a * dinv[None, :]).astype(jnp.bfloat16)

    def pad2(arr, r, c):
        return jnp.zeros((r, c), jnp.float32).at[:arr.shape[0], :arr.shape[1]].set(arr)

    w1_p = pad2(params["w_c1"], f_pad, hp).astype(jnp.bfloat16)
    w2_p = pad2(params["w_c2"], hp, hp).astype(jnp.bfloat16)

    # Fold BatchNorm (eval) into scale/shift; pack (bias, scale, shift) per layer.
    # Padded channels keep bias=scale=shift=0 so they stay exactly zero.
    def fold_bn(bias, g, bt, m, v):
        scale = g / jnp.sqrt(v + BN_EPS)
        shift = bt - m * scale
        aff = jnp.zeros((8, hp), jnp.float32)
        aff = aff.at[0, :HID].set(bias)
        aff = aff.at[1, :HID].set(scale)
        aff = aff.at[2, :HID].set(shift)
        return aff

    aff1 = fold_bn(params["b_c1"], params["bn1_g"], params["bn1_b"],
                   params["bn1_m"], params["bn1_v"])
    aff2 = fold_bn(params["b_c2"], params["bn2_g"], params["bn2_b"],
                   params["bn2_m"], params["bn2_v"])

    # Mean-pool projection: P[b, perm[i]] = 1/cnt[b]  (zero rows for pad graphs).
    cnts_f = jnp.asarray(cnts_np.astype(np.float32))
    batch_j = jnp.asarray(batch_np.astype(np.int32))
    p_scaled = jnp.zeros((b_pad, n_pad), jnp.float32).at[batch_j, perm].set(
        1.0 / cnts_f[batch_j])

    # Head (kept in f32): fc1 split into mean/max halves so no concat in-kernel;
    # padded class lanes get a -1e30 bias so log_softmax ignores them.
    w_fc1 = params["w_fc1"]
    w1a = pad2(w_fc1[:HID, :], hp, fc1p)
    w1b = pad2(w_fc1[HID:, :], hp, fc1p)
    bfc1 = pad2(params["b_fc1"].reshape(1, FC1), 1, fc1p)
    wfc2_p = pad2(params["w_fc2"], fc1p, out_pad)
    bfc2_p = jnp.full((1, out_pad), NEG_INF, jnp.float32).at[0, :NCLS].set(
        params["b_fc2"])

    offs = jnp.asarray(seg_offs.astype(np.int32))
    cnts = jnp.asarray(cnts_np.astype(np.int32))

    # VMEM budget: whole-array residents (no double buffering) + scratch +
    # in-kernel f32 intermediates, with headroom.
    vmem_operands = [a_p, x_p, w1_p, w2_p, aff1, aff2, p_scaled,
                     w1a, w1b, bfc1, wfc2_p, bfc2_p]
    resident = sum(int(t.size) * t.dtype.itemsize for t in vmem_operands)
    resident += (n_pad + max_seg) * hp * 4 + b_pad * hp * 4      # VMEM scratch
    resident += b_pad * out_pad * 4                              # output
    resident += 5 * n_pad * hp * 4 + n_pad * f_pad * 4           # live f32 temps
    vmem_limit = max(int(1.25 * resident) + (2 << 20), 16 << 20)

    kernel = functools.partial(fused_gcn_kernel, num_graphs, max_seg, n_pad)

    def smem_spec():
        return pl.BlockSpec(memory_space=pltpu.MemorySpace.SMEM)

    def vmem_spec():
        return pl.BlockSpec(memory_space=pltpu.MemorySpace.VMEM)

    out = pl.pallas_call(
        kernel,
        out_shape=jax.ShapeDtypeStruct((b_pad, out_pad), jnp.float32),
        in_specs=[smem_spec(), smem_spec()] + [vmem_spec() for _ in range(12)],
        out_specs=vmem_spec(),
        scratch_shapes=[pltpu.VMEM((n_pad + max_seg, hp), jnp.float32),
                        pltpu.VMEM((b_pad, hp), jnp.float32)],
        compiler_params=pltpu.CompilerParams(vmem_limit_bytes=vmem_limit),
    )(offs, cnts, a_p, x_p, w1_p, w2_p, aff1, aff2,
      p_scaled, w1a, w1b, bfc1, wfc2_p, bfc2_p)

    return out[:num_graphs, :NCLS]


# ---------------------------------------------------------------------------
# Pure-JAX reference.  mirror_bf16=True casts the GCN matmul operands to bf16
# (f32 accumulation), matching the kernel's MXU precision choice, for a tight
# numerics check; mirror_bf16=False is the full-f32 module semantics.
# ---------------------------------------------------------------------------
def reference_forward(x, edge_index, batch, params, mirror_bf16=False):
    n = x.shape[0]
    a = jnp.zeros((n, n), jnp.float32).at[edge_index[0], edge_index[1]].set(1.0)
    a = a + jnp.eye(n, dtype=jnp.float32)
    deg = jnp.sum(a, axis=1)
    dinv = jnp.where(deg > 0, 1.0 / jnp.sqrt(deg), 0.0)
    a_norm = dinv[:, None] * a * dinv[None, :]

    def mm(p, q):
        if mirror_bf16:
            p = p.astype(jnp.bfloat16)
            q = q.astype(jnp.bfloat16)
        return jnp.dot(p, q, preferred_element_type=jnp.float32)

    def bn_affine(h, g, bt, m, v):
        scale = g / jnp.sqrt(v + BN_EPS)
        return h * scale + (bt - m * scale)

    # layer 1 (propagate-then-transform, math-equal to GCNConv's transform-first)
    h = jnp.maximum(mm(mm(a_norm, x), params["w_c1"]) + params["b_c1"], 0.0)
    h = bn_affine(h, params["bn1_g"], params["bn1_b"],
                  params["bn1_m"], params["bn1_v"])
    # layer 2 (transform-then-propagate)
    h = jnp.maximum(mm(a_norm, mm(h, params["w_c2"])) + params["b_c2"], 0.0)
    h = bn_affine(h, params["bn2_g"], params["bn2_b"],
                  params["bn2_m"], params["bn2_v"])

    num_graphs = int(np.asarray(batch).max()) + 1
    member = (jnp.asarray(batch)[None, :] == jnp.arange(num_graphs)[:, None])
    p = member.astype(jnp.float32)
    cnt = jnp.sum(p, axis=1, keepdims=True)
    mean_pool = (p @ h) / cnt
    max_pool = jnp.max(jnp.where(member[:, :, None], h[None], NEG_INF), axis=1)
    feat = jnp.concatenate([mean_pool, max_pool], axis=1)
    h1 = jnp.maximum(feat @ params["w_fc1"] + params["b_fc1"], 0.0)
    z = h1 @ params["w_fc2"] + params["b_fc2"]
    return jax.nn.log_softmax(z, axis=1)


if __name__ == "__main__":
    key = jax.random.PRNGKey(0)
    ks = jax.random.split(key, 16)

    # Small synthetic problem consistent with the module's forward:
    num_features = 32          # stand-in for dataset.num_features
    nodes_per_graph = 6
    num_graphs = 4
    n_nodes = nodes_per_graph * num_graphs    # 24

    # node features
    x = jax.random.normal(ks[0], (n_nodes, num_features), jnp.float32)

    # deterministic block-diagonal graph structure (ring + chord per graph)
    edges = []
    for g in range(num_graphs):
        base = g * nodes_per_graph
        for i in range(nodes_per_graph):
            j = (i + 1) % nodes_per_graph
            edges.append((base + i, base + j))
            edges.append((base + j, base + i))
        edges.append((base, base + 3))
        edges.append((base + 3, base))
    edge_index = jnp.array(edges, dtype=jnp.int32).T        # [2, E]
    batch = jnp.repeat(jnp.arange(num_graphs, dtype=jnp.int32), nodes_per_graph)

    # deterministic parameter init (shapes from the module's __init__)
    params = {
        "w_c1": 0.1 * jax.random.normal(ks[1], (num_features, HID), jnp.float32),
        "b_c1": 0.1 * jax.random.normal(ks[2], (HID,), jnp.float32),
        "w_c2": 0.1 * jax.random.normal(ks[3], (HID, HID), jnp.float32),
        "b_c2": 0.1 * jax.random.normal(ks[4], (HID,), jnp.float32),
        "bn1_g": 1.0 + 0.1 * jax.random.normal(ks[5], (HID,), jnp.float32),
        "bn1_b": 0.1 * jax.random.normal(ks[6], (HID,), jnp.float32),
        "bn1_m": 0.05 * jax.random.normal(ks[7], (HID,), jnp.float32),
        "bn1_v": 1.0 + 0.1 * jax.random.uniform(ks[8], (HID,), jnp.float32),
        "bn2_g": 1.0 + 0.1 * jax.random.normal(ks[9], (HID,), jnp.float32),
        "bn2_b": 0.1 * jax.random.normal(ks[10], (HID,), jnp.float32),
        "bn2_m": 0.05 * jax.random.normal(ks[11], (HID,), jnp.float32),
        "bn2_v": 1.0 + 0.1 * jax.random.uniform(ks[12], (HID,), jnp.float32),
        "w_fc1": 0.1 * jax.random.normal(ks[13], (2 * HID, FC1), jnp.float32),
        "b_fc1": 0.1 * jax.random.normal(ks[14], (FC1,), jnp.float32),
        "w_fc2": 0.1 * jax.random.normal(ks[15], (FC1, NCLS), jnp.float32),
        "b_fc2": jnp.zeros((NCLS,), jnp.float32),
    }

    out = jax.block_until_ready(gcn_net_forward(x, edge_index, batch, params))
    assert out.shape == (num_graphs, NCLS)

    # Tight check vs. a reference that mirrors the kernel's bf16 MXU precision.
    ref_bf16 = jax.block_until_ready(
        reference_forward(x, edge_index, batch, params, mirror_bf16=True))
    err_bf16 = float(jnp.max(jnp.abs(out - ref_bf16)))
    assert jnp.allclose(out, ref_bf16, atol=2e-2, rtol=2e-2), (
        f"bf16-mirrored reference mismatch, max abs err {err_bf16}")

    # Looser check vs. the full-f32 module semantics (bf16 matmul rounding only).
    ref_f32 = jax.block_until_ready(
        reference_forward(x, edge_index, batch, params, mirror_bf16=False))
    err_f32 = float(jnp.max(jnp.abs(out - ref_f32)))
    assert jnp.allclose(out, ref_f32, atol=1.5e-1, rtol=1.5e-1), (
        f"f32 reference mismatch, max abs err {err_f32}")

    print("KERNEL_OK")
</pallas_src>

<mosaic_0001>
module attributes {stable_mosaic.version = 11 : i64} {
  func.func @fused_gcn_kernel(%arg0: memref<4xi32, #tpu.memory_space<smem>>, %arg1: memref<4xi32, #tpu.memory_space<smem>>, %arg2: memref<32x32xbf16, #tpu.memory_space<vmem>>, %arg3: memref<32x128xbf16, #tpu.memory_space<vmem>>, %arg4: memref<128x256xbf16, #tpu.memory_space<vmem>>, %arg5: memref<256x256xbf16, #tpu.memory_space<vmem>>, %arg6: memref<8x256xf32, #tpu.memory_space<vmem>>, %arg7: memref<8x256xf32, #tpu.memory_space<vmem>>, %arg8: memref<8x32xf32, #tpu.memory_space<vmem>>, %arg9: memref<256x128xf32, #tpu.memory_space<vmem>>, %arg10: memref<256x128xf32, #tpu.memory_space<vmem>>, %arg11: memref<1x128xf32, #tpu.memory_space<vmem>>, %arg12: memref<128x128xf32, #tpu.memory_space<vmem>>, %arg13: memref<1x128xf32, #tpu.memory_space<vmem>>, %arg14: memref<8x128xf32, #tpu.memory_space<vmem>>, %arg15: memref<40x256xf32, #tpu.memory_space<vmem>>, %arg16: memref<8x256xf32, #tpu.memory_space<vmem>>) attributes {dimension_semantics = [], scalar_prefetch = 0 : i64, scratch_operands = 2 : i64, tpu.core_type = #tpu.core_type<tc>} {
    %c0 = arith.constant 0 : index
    %c0_0 = arith.constant 0 : index
    %0 = vector.load %arg2[%c0, %c0_0] : memref<32x32xbf16, #tpu.memory_space<vmem>>, vector<32x32xbf16>
    %c0_1 = arith.constant 0 : index
    %c0_2 = arith.constant 0 : index
    %1 = vector.load %arg3[%c0_1, %c0_2] : memref<32x128xbf16, #tpu.memory_space<vmem>>, vector<32x128xbf16>
    %cst = arith.constant dense<0.000000e+00> : vector<32x128xf32>
    %2 = tpu.matmul %0, %1, %cst {dimension_numbers = #tpu.dot_dimension_numbers<[1], [0], [0], [1], [0, 0, 1, 1], [], []>} : vector<32x32xbf16>, vector<32x128xbf16>, vector<32x128xf32> -> vector<32x128xf32>
    %3 = arith.truncf %2 : vector<32x128xf32> to vector<32x128xbf16>
    %c0_3 = arith.constant 0 : index
    %c0_4 = arith.constant 0 : index
    %4 = vector.load %arg4[%c0_3, %c0_4] : memref<128x256xbf16, #tpu.memory_space<vmem>>, vector<128x256xbf16>
    %cst_5 = arith.constant dense<0.000000e+00> : vector<32x256xf32>
    %5 = tpu.matmul %3, %4, %cst_5 {dimension_numbers = #tpu.dot_dimension_numbers<[1], [0], [0], [1], [0, 0, 1, 1], [], []>} : vector<32x128xbf16>, vector<128x256xbf16>, vector<32x256xf32> -> vector<32x256xf32>
    %c0_6 = arith.constant 0 : index
    %c0_7 = arith.constant 0 : index
    %6 = vector.load %arg6[%c0_6, %c0_7] : memref<8x256xf32, #tpu.memory_space<vmem>>, vector<1x256xf32>
    %7 = vector.broadcast %6 : vector<1x256xf32> to vector<32x256xf32>
    %8 = arith.addf %5, %7 : vector<32x256xf32>
    %cst_8 = arith.constant 0.000000e+00 : f32
    %9 = vector.broadcast %cst_8 : f32 to vector<32x256xf32>
    %10 = arith.maximumf %8, %9 : vector<32x256xf32>
    %c1 = arith.constant 1 : index
    %c0_9 = arith.constant 0 : index
    %11 = vector.load %arg6[%c1, %c0_9] : memref<8x256xf32, #tpu.memory_space<vmem>>, vector<1x256xf32>
    %12 = vector.broadcast %11 : vector<1x256xf32> to vector<32x256xf32>
    %13 = arith.mulf %10, %12 : vector<32x256xf32>
    %c2 = arith.constant 2 : index
    %c0_10 = arith.constant 0 : index
    %14 = vector.load %arg6[%c2, %c0_10] : memref<8x256xf32, #tpu.memory_space<vmem>>, vector<1x256xf32>
    %15 = vector.broadcast %14 : vector<1x256xf32> to vector<32x256xf32>
    %16 = arith.addf %13, %15 : vector<32x256xf32>
    %17 = arith.truncf %16 : vector<32x256xf32> to vector<32x256xbf16>
    %c0_11 = arith.constant 0 : index
    %c0_12 = arith.constant 0 : index
    %18 = vector.load %arg5[%c0_11, %c0_12] : memref<256x256xbf16, #tpu.memory_space<vmem>>, vector<256x256xbf16>
    %cst_13 = arith.constant dense<0.000000e+00> : vector<32x256xf32>
    %19 = tpu.matmul %17, %18, %cst_13 {dimension_numbers = #tpu.dot_dimension_numbers<[1], [0], [0], [1], [0, 0, 1, 1], [], []>} : vector<32x256xbf16>, vector<256x256xbf16>, vector<32x256xf32> -> vector<32x256xf32>
    %20 = arith.truncf %19 : vector<32x256xf32> to vector<32x256xbf16>
    %cst_14 = arith.constant dense<0.000000e+00> : vector<32x256xf32>
    %21 = tpu.matmul %0, %20, %cst_14 {dimension_numbers = #tpu.dot_dimension_numbers<[1], [0], [0], [1], [0, 0, 1, 1], [], []>} : vector<32x32xbf16>, vector<32x256xbf16>, vector<32x256xf32> -> vector<32x256xf32>
    %c0_15 = arith.constant 0 : index
    %c0_16 = arith.constant 0 : index
    %22 = vector.load %arg7[%c0_15, %c0_16] : memref<8x256xf32, #tpu.memory_space<vmem>>, vector<1x256xf32>
    %23 = vector.broadcast %22 : vector<1x256xf32> to vector<32x256xf32>
    %24 = arith.addf %21, %23 : vector<32x256xf32>
    %cst_17 = arith.constant 0.000000e+00 : f32
    %25 = vector.broadcast %cst_17 : f32 to vector<32x256xf32>
    %26 = arith.maximumf %24, %25 : vector<32x256xf32>
    %c1_18 = arith.constant 1 : index
    %c0_19 = arith.constant 0 : index
    %27 = vector.load %arg7[%c1_18, %c0_19] : memref<8x256xf32, #tpu.memory_space<vmem>>, vector<1x256xf32>
    %28 = vector.broadcast %27 : vector<1x256xf32> to vector<32x256xf32>
    %29 = arith.mulf %26, %28 : vector<32x256xf32>
    %c2_20 = arith.constant 2 : index
    %c0_21 = arith.constant 0 : index
    %30 = vector.load %arg7[%c2_20, %c0_21] : memref<8x256xf32, #tpu.memory_space<vmem>>, vector<1x256xf32>
    %31 = vector.broadcast %30 : vector<1x256xf32> to vector<32x256xf32>
    %32 = arith.addf %29, %31 : vector<32x256xf32>
    %c0_22 = arith.constant 0 : index
    %c0_23 = arith.constant 0 : index
    %33 = vector.load %arg8[%c0_22, %c0_23] : memref<8x32xf32, #tpu.memory_space<vmem>>, vector<8x32xf32>
    %cst_24 = arith.constant dense<0.000000e+00> : vector<8x256xf32>
    %34 = tpu.matmul %33, %32, %cst_24 {dimension_numbers = #tpu.dot_dimension_numbers<[1], [0], [0], [1], [0, 0, 1, 1], [], []>} : vector<8x32xf32>, vector<32x256xf32>, vector<8x256xf32> -> vector<8x256xf32>
    %c0_25 = arith.constant 0 : index
    %c0_26 = arith.constant 0 : index
    %35 = vector.load %arg15[%c0_25, %c0_26] : memref<40x256xf32, #tpu.memory_space<vmem>>, vector<32x256xf32>
    tpu.vector_store %arg15[%c0_25, %c0_26], %32 {strides = array<i32>} : memref<40x256xf32, #tpu.memory_space<vmem>>, vector<32x256xf32>,
    %cst_27 = arith.constant 0.000000e+00 : f32
    %36 = vector.broadcast %cst_27 : f32 to vector<8x256xf32>
    %c0_28 = arith.constant 0 : index
    %c0_29 = arith.constant 0 : index
    %37 = vector.load %arg16[%c0_28, %c0_29] : memref<8x256xf32, #tpu.memory_space<vmem>>, vector<8x256xf32>
    tpu.vector_store %arg16[%c0_28, %c0_29], %36 {strides = array<i32>} : memref<8x256xf32, #tpu.memory_space<vmem>>, vector<8x256xf32>,
    %38 = tpu.iota {dimensions = array<i32: 0>} : vector<8x1xi32>
    %c0_30 = arith.constant 0 : index
    %39 = memref.load %arg0[%c0_30] : memref<4xi32, #tpu.memory_space<smem>>
    %40 = tpu.assume_multiple %39, 8 : i32
    %c0_31 = arith.constant 0 : index
    %41 = memref.load %arg1[%c0_31] : memref<4xi32, #tpu.memory_space<smem>>
    %42 = arith.index_cast %40 : i32 to index
    %c0_32 = arith.constant 0 : index
    %43 = vector.load %arg15[%42, %c0_32] : memref<40x256xf32, #tpu.memory_space<vmem>>, vector<8x256xf32>
    %44 = vector.broadcast %41 : i32 to vector<8x1xi32>
    %45 = arith.cmpi slt, %38, %44 : vector<8x1xi32>
    %cst_33 = arith.constant -1.000000e+30 : f32
    %46 = vector.shape_cast %45 : vector<8x1xi1> to vector<8x1xi1>
    %47 = vector.broadcast %46 : vector<8x1xi1> to vector<8x256xi1>
    %48 = vector.broadcast %cst_33 : f32 to vector<8x256xf32>
    %49 = arith.select %47, %43, %48 : vector<8x256xi1>, vector<8x256xf32>
    %cst_34 = arith.constant dense<0xFF800000> : vector<256xf32>
    %50 = vector.multi_reduction <maximumf>, %49, %cst_34 [0] : vector<8x256xf32> to vector<256xf32>
    %51 = vector.shape_cast %50 : vector<256xf32> to vector<1x256xf32>
    %c0_35 = arith.constant 0 : index
    %c0_36 = arith.constant 0 : index
    %52 = vector.load %arg16[%c0_35, %c0_36] : memref<8x256xf32, #tpu.memory_space<vmem>>, vector<1x256xf32>
    tpu.vector_store %arg16[%c0_35, %c0_36], %51 {strides = array<i32>} : memref<8x256xf32, #tpu.memory_space<vmem>>, vector<1x256xf32>,
    %c1_37 = arith.constant 1 : index
    %53 = memref.load %arg0[%c1_37] : memref<4xi32, #tpu.memory_space<smem>>
    %54 = tpu.assume_multiple %53, 8 : i32
    %c1_38 = arith.constant 1 : index
    %55 = memref.load %arg1[%c1_38] : memref<4xi32, #tpu.memory_space<smem>>
    %56 = arith.index_cast %54 : i32 to index
    %c0_39 = arith.constant 0 : index
    %57 = vector.load %arg15[%56, %c0_39] : memref<40x256xf32, #tpu.memory_space<vmem>>, vector<8x256xf32>
    %58 = vector.broadcast %55 : i32 to vector<8x1xi32>
    %59 = arith.cmpi slt, %38, %58 : vector<8x1xi32>
    %cst_40 = arith.constant -1.000000e+30 : f32
    %60 = vector.shape_cast %59 : vector<8x1xi1> to vector<8x1xi1>
    %61 = vector.broadcast %60 : vector<8x1xi1> to vector<8x256xi1>
    %62 = vector.broadcast %cst_40 : f32 to vector<8x256xf32>
    %63 = arith.select %61, %57, %62 : vector<8x256xi1>, vector<8x256xf32>
    %cst_41 = arith.constant dense<0xFF800000> : vector<256xf32>
    %64 = vector.multi_reduction <maximumf>, %63, %cst_41 [0] : vector<8x256xf32> to vector<256xf32>
    %65 = vector.shape_cast %64 : vector<256xf32> to vector<1x256xf32>
    %c1_42 = arith.constant 1 : index
    %c0_43 = arith.constant 0 : index
    %66 = vector.load %arg16[%c1_42, %c0_43] : memref<8x256xf32, #tpu.memory_space<vmem>>, vector<1x256xf32>
    tpu.vector_store %arg16[%c1_42, %c0_43], %65 {strides = array<i32>} : memref<8x256xf32, #tpu.memory_space<vmem>>, vector<1x256xf32>,
    %c2_44 = arith.constant 2 : index
    %67 = memref.load %arg0[%c2_44] : memref<4xi32, #tpu.memory_space<smem>>
    %68 = tpu.assume_multiple %67, 8 : i32
    %c2_45 = arith.constant 2 : index
    %69 = memref.load %arg1[%c2_45] : memref<4xi32, #tpu.memory_space<smem>>
    %70 = arith.index_cast %68 : i32 to index
    %c0_46 = arith.constant 0 : index
    %71 = vector.load %arg15[%70, %c0_46] : memref<40x256xf32, #tpu.memory_space<vmem>>, vector<8x256xf32>
    %72 = vector.broadcast %69 : i32 to vector<8x1xi32>
    %73 = arith.cmpi slt, %38, %72 : vector<8x1xi32>
    %cst_47 = arith.constant -1.000000e+30 : f32
    %74 = vector.shape_cast %73 : vector<8x1xi1> to vector<8x1xi1>
    %75 = vector.broadcast %74 : vector<8x1xi1> to vector<8x256xi1>
    %76 = vector.broadcast %cst_47 : f32 to vector<8x256xf32>
    %77 = arith.select %75, %71, %76 : vector<8x256xi1>, vector<8x256xf32>
    %cst_48 = arith.constant dense<0xFF800000> : vector<256xf32>
    %78 = vector.multi_reduction <maximumf>, %77, %cst_48 [0] : vector<8x256xf32> to vector<256xf32>
    %79 = vector.shape_cast %78 : vector<256xf32> to vector<1x256xf32>
    %c2_49 = arith.constant 2 : index
    %c0_50 = arith.constant 0 : index
    %80 = vector.load %arg16[%c2_49, %c0_50] : memref<8x256xf32, #tpu.memory_space<vmem>>, vector<1x256xf32>
    tpu.vector_store %arg16[%c2_49, %c0_50], %79 {strides = array<i32>} : memref<8x256xf32, #tpu.memory_space<vmem>>, vector<1x256xf32>,
    %c3 = arith.constant 3 : index
    %81 = memref.load %arg0[%c3] : memref<4xi32, #tpu.memory_space<smem>>
    %82 = tpu.assume_multiple %81, 8 : i32
    %c3_51 = arith.constant 3 : index
    %83 = memref.load %arg1[%c3_51] : memref<4xi32, #tpu.memory_space<smem>>
    %84 = arith.index_cast %82 : i32 to index
    %c0_52 = arith.constant 0 : index
    %85 = vector.load %arg15[%84, %c0_52] : memref<40x256xf32, #tpu.memory_space<vmem>>, vector<8x256xf32>
    %86 = vector.broadcast %83 : i32 to vector<8x1xi32>
    %87 = arith.cmpi slt, %38, %86 : vector<8x1xi32>
    %cst_53 = arith.constant -1.000000e+30 : f32
    %88 = vector.shape_cast %87 : vector<8x1xi1> to vector<8x1xi1>
    %89 = vector.broadcast %88 : vector<8x1xi1> to vector<8x256xi1>
    %90 = vector.broadcast %cst_53 : f32 to vector<8x256xf32>
    %91 = arith.select %89, %85, %90 : vector<8x256xi1>, vector<8x256xf32>
    %cst_54 = arith.constant dense<0xFF800000> : vector<256xf32>
    %92 = vector.multi_reduction <maximumf>, %91, %cst_54 [0] : vector<8x256xf32> to vector<256xf32>
    %93 = vector.shape_cast %92 : vector<256xf32> to vector<1x256xf32>
    %c3_55 = arith.constant 3 : index
    %c0_56 = arith.constant 0 : index
    %94 = vector.load %arg16[%c3_55, %c0_56] : memref<8x256xf32, #tpu.memory_space<vmem>>, vector<1x256xf32>
    tpu.vector_store %arg16[%c3_55, %c0_56], %93 {strides = array<i32>} : memref<8x256xf32, #tpu.memory_space<vmem>>, vector<1x256xf32>,
    %c0_57 = arith.constant 0 : index
    %c0_58 = arith.constant 0 : index
    %95 = vector.load %arg9[%c0_57, %c0_58] : memref<256x128xf32, #tpu.memory_space<vmem>>, vector<256x128xf32>
    %cst_59 = arith.constant dense<0.000000e+00> : vector<8x128xf32>
    %96 = tpu.matmul %34, %95, %cst_59 {dimension_numbers = #tpu.dot_dimension_numbers<[1], [0], [0], [1], [0, 0, 1, 1], [], []>} : vector<8x256xf32>, vector<256x128xf32>, vector<8x128xf32> -> vector<8x128xf32>
    %c0_60 = arith.constant 0 : index
    %c0_61 = arith.constant 0 : index
    %97 = vector.load %arg16[%c0_60, %c0_61] : memref<8x256xf32, #tpu.memory_space<vmem>>, vector<8x256xf32>
    %c0_62 = arith.constant 0 : index
    %c0_63 = arith.constant 0 : index
    %98 = vector.load %arg10[%c0_62, %c0_63] : memref<256x128xf32, #tpu.memory_space<vmem>>, vector<256x128xf32>
    %cst_64 = arith.constant dense<0.000000e+00> : vector<8x128xf32>
    %99 = tpu.matmul %97, %98, %cst_64 {dimension_numbers = #tpu.dot_dimension_numbers<[1], [0], [0], [1], [0, 0, 1, 1], [], []>} : vector<8x256xf32>, vector<256x128xf32>, vector<8x128xf32> -> vector<8x128xf32>
    %100 = arith.addf %96, %99 : vector<8x128xf32>
    %c0_65 = arith.constant 0 : index
    %c0_66 = arith.constant 0 : index
    %101 = vector.load %arg11[%c0_65, %c0_66] : memref<1x128xf32, #tpu.memory_space<vmem>>, vector<1x128xf32>
    %102 = vector.broadcast %101 : vector<1x128xf32> to vector<8x128xf32>
    %103 = arith.addf %100, %102 : vector<8x128xf32>
    %cst_67 = arith.constant 0.000000e+00 : f32
    %104 = vector.broadcast %cst_67 : f32 to vector<8x128xf32>
    %105 = arith.maximumf %103, %104 : vector<8x128xf32>
    %c0_68 = arith.constant 0 : index
    %c0_69 = arith.constant 0 : index
    %106 = vector.load %arg12[%c0_68, %c0_69] : memref<128x128xf32, #tpu.memory_space<vmem>>, vector<128x128xf32>
    %cst_70 = arith.constant dense<0.000000e+00> : vector<8x128xf32>
    %107 = tpu.matmul %105, %106, %cst_70 {dimension_numbers = #tpu.dot_dimension_numbers<[1], [0], [0], [1], [0, 0, 1, 1], [], []>} : vector<8x128xf32>, vector<128x128xf32>, vector<8x128xf32> -> vector<8x128xf32>
    %c0_71 = arith.constant 0 : index
    %c0_72 = arith.constant 0 : index
    %108 = vector.load %arg13[%c0_71, %c0_72] : memref<1x128xf32, #tpu.memory_space<vmem>>, vector<1x128xf32>
    %109 = vector.broadcast %108 : vector<1x128xf32> to vector<8x128xf32>
    %110 = arith.addf %107, %109 : vector<8x128xf32>
    %cst_73 = arith.constant dense<0xFF800000> : vector<8xf32>
    %111 = vector.multi_reduction <maximumf>, %110, %cst_73 [1] : vector<8x128xf32> to vector<8xf32>
    %112 = vector.shape_cast %111 : vector<8xf32> to vector<8x1xf32>
    %113 = vector.broadcast %112 : vector<8x1xf32> to vector<8x128xf32>
    %114 = arith.subf %110, %113 : vector<8x128xf32>
    %115 = math.exp %114 : vector<8x128xf32>
    %cst_74 = arith.constant dense<0.000000e+00> : vector<8xf32>
    %116 = vector.multi_reduction <add>, %115, %cst_74 [1] : vector<8x128xf32> to vector<8xf32>
    %117 = vector.shape_cast %116 : vector<8xf32> to vector<8x1xf32>
    %118 = math.log %117 : vector<8x1xf32>
    %119 = vector.broadcast %118 : vector<8x1xf32> to vector<8x128xf32>
    %120 = arith.subf %114, %119 : vector<8x128xf32>
    %c0_75 = arith.constant 0 : index
    %c0_76 = arith.constant 0 : index
    %121 = vector.load %arg14[%c0_75, %c0_76] : memref<8x128xf32, #tpu.memory_space<vmem>>, vector<8x128xf32>
    tpu.vector_store %arg14[%c0_75, %c0_76], %120 {strides = array<i32>} : memref<8x128xf32, #tpu.memory_space<vmem>>, vector<8x128xf32>,
    return
  }
}

</mosaic_0001>

<llo_original>
// kernel: tpu_custom_call.1
$region0: #{tpu_custom_call.1}
  #allocation0 [shape = 'u32[]', space=smem, size = 0x4, offset = 0x4, fixed_abs, tag = 'smem constant byte address 0x4 - core index']
  #allocation1 [shape = 'u32[144,128]{1,0:T(1,128)}', space=vmem, size = 0x12000, scoped, tag = 'internal scratch']
  #allocation2 [shape = 'f32[40,256]{1,0:T(8,128)}', space=vmem, size = 0xa000, scoped, tag = 'scratch operand']
  #allocation3 [shape = 'f32[8,256]{1,0:T(8,128)}', space=vmem, size = 0x2000, scoped, tag = 'scratch operand']
  %s0 = inlined_call_operand.hbm [shape: s32[4], index: 0, kind: input, shape index: {}]
  %s1 = inlined_call_operand.vmem [shape: s32[4], index: 1, kind: input, shape index: {}]
  %s2 = inlined_call_operand.hbm [shape: bf16[32,32], index: 2, kind: input, shape index: {}]
  %s3 = inlined_call_operand.hbm [shape: bf16[32,128], index: 3, kind: input, shape index: {}]
  %s4 = inlined_call_operand.hbm [shape: bf16[128,256], index: 4, kind: input, shape index: {}]
  %s5 = inlined_call_operand.hbm [shape: bf16[256,256], index: 5, kind: input, shape index: {}]
  %s6 = inlined_call_operand.vmem [shape: f32[8,256], index: 6, kind: input, shape index: {}]
  %s7 = inlined_call_operand.hbm [shape: f32[8,256], index: 7, kind: input, shape index: {}]
  %s8 = inlined_call_operand.vmem [shape: f32[8,32], index: 8, kind: input, shape index: {}]
  %s9 = inlined_call_operand.hbm [shape: f32[256,128], index: 9, kind: input, shape index: {}]
  %s10 = inlined_call_operand.hbm [shape: f32[256,128], index: 10, kind: input, shape index: {}]
  %s11 = inlined_call_operand.vmem [shape: f32[1,128], index: 11, kind: input, shape index: {}]
  %s12 = inlined_call_operand.hbm [shape: f32[128,128], index: 12, kind: input, shape index: {}]
  %s13 = inlined_call_operand.vmem [shape: f32[1,128], index: 13, kind: input, shape index: {}]
  %s14 = inlined_call_operand.hbm [shape: f32[8,128], index: 14, kind: output, shape index: {}]
  %s15 = sld [smem:[#allocation0]]
  $region106: #{tpu_custom_call.1} parent=0
    _
  %s17 = ssub.s32 1, %s15
  %s18 = scalar_select 0, %s17, %s15
  $region1: #{tpu_custom_call.1} parent=0
    #allocation4 [shape = 'u8[512]{0}', space=smem, size = 0x200, scoped, tag = 'input window, operand 0, single buffered']
    #allocation5 [shape = 's32[1]{0}', space=sflag, size = 0x4, scoped, tag = 'scoped memory for tpu_custom_call.1']
    #allocation6 [shape = 's32[1]{0}', space=sflag, size = 0x4, scoped, tag = 'scoped memory for tpu_custom_call.1']
    #allocation7 [shape = 's32[1]{0}', space=sflag, size = 0x4, scoped, tag = 'scoped memory for tpu_custom_call.1']
    #allocation8 [shape = 's32[1]{0}', space=sflag, size = 0x4, scoped, tag = 'scoped memory for tpu_custom_call.1']
    #allocation9 [shape = 'u8[512]{0}', space=smem, size = 0x200, scoped, tag = 'input window, operand 1, single buffered']
    #allocation10 [shape = 'u8[8192]{0}', space=vmem, size = 0x2000, scoped, tag = 'input window, operand 2, single buffered']
    #allocation11 [shape = 'u8[8192]{0}', space=vmem, size = 0x2000, scoped, tag = 'input window, operand 3, single buffered']
    #allocation12 [shape = 's32[1]{0}', space=sflag, size = 0x4, scoped, tag = 'scoped memory for tpu_custom_call.1']
    #allocation13 [shape = 'u8[65536]{0}', space=vmem, size = 0x10000, scoped, tag = 'input window, operand 4, single buffered']
    #allocation14 [shape = 'u8[131072]{0}', space=vmem, size = 0x20000, scoped, tag = 'input window, operand 5, single buffered']
    #allocation15 [shape = 's32[1]{0}', space=sflag, size = 0x4, scoped, tag = 'scoped memory for tpu_custom_call.1']
    #allocation16 [shape = 'u8[8192]{0}', space=vmem, size = 0x2000, scoped, tag = 'input window, operand 7, single buffered']
    #allocation17 [shape = 'u8[131072]{0}', space=vmem, size = 0x20000, scoped, tag = 'input window, operand 9, single buffered']
    #allocation18 [shape = 's32[1]{0}', space=sflag, size = 0x4, scoped, tag = 'scoped memory for tpu_custom_call.1']
    #allocation19 [shape = 'u8[131072]{0}', space=vmem, size = 0x20000, scoped, tag = 'input window, operand 10, single buffered']
    #allocation20 [shape = 'u8[65536]{0}', space=vmem, size = 0x10000, scoped, tag = 'input window, operand 12, single buffered']
    #allocation21 [shape = 's32[1]{0}', space=sflag, size = 0x4, scoped, tag = 'scoped memory for tpu_custom_call.1']
    #allocation22 [shape = 'u8[4096]{0}', space=vmem, size = 0x1000, scoped, tag = 'output window, operand 0, single buffered']
    %19 = vsyncpa [#allocation7], 0
    %20 = vsyncpa [#allocation8], 0
    %21 = vsyncpa [#allocation5], 0
    %22 = vsyncpa [#allocation12], 0
    %23 = vsyncpa [#allocation15], 0
    %24 = vsyncpa [#allocation18], 0
    %25 = vsyncpa [#allocation21], 0
    %26 = vsyncpa [#allocation6], 0
    // Predicated region
    $region2: #{tpu_custom_call.1} parent=1 // pred_check
      _
    $region3: #{tpu_custom_call.1} parent=1 // pred_check_branch
      %28 = sbr.rel (0) target = $region5
    $region4: #{tpu_custom_call.1} parent=1 // pred_region
      %s30 = ssub.s32 16, 16
      %31 = vsyncadd [#allocation7], %s30
      %34 = dma.hbm_to_smem %s0, 16, [#allocation4], [#allocation7]
    $region5: #{tpu_custom_call.1} parent=1 // pred_fallthru
      _
    // Predicated region
    $region6: #{tpu_custom_call.1} parent=1 // pred_check
      _
    $region7: #{tpu_custom_call.1} parent=1 // pred_check_branch
      %36 = sbr.rel (0) target = $region9
    $region8: #{tpu_custom_call.1} parent=1 // pred_region
      %s38 = ssub.s32 16, 16
      %39 = vsyncadd [#allocation8], %s38
      %s41 = sshll.u32 %s1, 4
      %s42 = int_to_ptr.vmem [resolvable:$true] %s41
      %44 = dma.vmem_to_smem %s42, 16, [#allocation9], [#allocation8]
    $region9: #{tpu_custom_call.1} parent=1 // pred_fallthru
      _
    // Predicated region
    $region10: #{tpu_custom_call.1} parent=1 // pred_check
      _
    $region11: #{tpu_custom_call.1} parent=1 // pred_check_branch
      %46 = sbr.rel (0) target = $region13
    $region12: #{tpu_custom_call.1} parent=1 // pred_region
      %s48 = ssub.s32 256, 256
      %49 = vsyncadd [#allocation5], %s48
      %s50 = sshll.u32 [#allocation10], 4
      %s51 = int_to_ptr.vmem [resolvable:$true] %s50
      %56 = dma.hbm_to_vmem [thread:$0]  %s2, 256, %s51, [#allocation5], 64, 64, 4
    $region13: #{tpu_custom_call.1} parent=1 // pred_fallthru
      _
    // Predicated region
    $region14: #{tpu_custom_call.1} parent=1 // pred_check
      _
    $region15: #{tpu_custom_call.1} parent=1 // pred_check_branch
      %58 = sbr.rel (0) target = $region17
    $region16: #{tpu_custom_call.1} parent=1 // pred_region
      %s60 = ssub.s32 256, 256
      %61 = vsyncadd [#allocation12], %s60
      %s62 = sshll.u32 [#allocation11], 4
      %s63 = int_to_ptr.vmem [resolvable:$true] %s62
      %68 = dma.hbm_to_vmem [thread:$0]  %s3, 256, %s63, [#allocation12], 64, 64, 4
    $region17: #{tpu_custom_call.1} parent=1 // pred_fallthru
      _
    // Predicated region
    $region18: #{tpu_custom_call.1} parent=1 // pred_check
      _
    $region19: #{tpu_custom_call.1} parent=1 // pred_check_branch
      %70 = sbr.rel (0) target = $region21
    $region20: #{tpu_custom_call.1} parent=1 // pred_region
      %s72 = ssub.s32 2048, 2048
      %73 = vsyncadd [#allocation12], %s72
      %s74 = sshll.u32 [#allocation13], 4
      %s75 = int_to_ptr.vmem [resolvable:$true] %s74
      %80 = dma.hbm_to_vmem [thread:$0]  %s4, 2048, %s75, [#allocation12], 128, 128, 8
    $region21: #{tpu_custom_call.1} parent=1 // pred_fallthru
      _
    // Predicated region
    $region22: #{tpu_custom_call.1} parent=1 // pred_check
      _
    $region23: #{tpu_custom_call.1} parent=1 // pred_check_branch
      %82 = sbr.rel (0) target = $region25
    $region24: #{tpu_custom_call.1} parent=1 // pred_region
      %s84 = ssub.s32 4096, 4096
      %85 = vsyncadd [#allocation15], %s84
      %s86 = sshll.u32 [#allocation14], 4
      %s87 = int_to_ptr.vmem [resolvable:$true] %s86
      %92 = dma.hbm_to_vmem [thread:$0]  %s5, 4096, %s87, [#allocation15], 128, 128, 8
    $region25: #{tpu_custom_call.1} parent=1 // pred_fallthru
      _
    // Predicated region
    $region26: #{tpu_custom_call.1} parent=1 // pred_check
      _
    $region27: #{tpu_custom_call.1} parent=1 // pred_check_branch
      %94 = sbr.rel (0) target = $region29
    $region28: #{tpu_custom_call.1} parent=1 // pred_region
      _
    $region29: #{tpu_custom_call.1} parent=1 // pred_fallthru
      _
    // Predicated region
    $region30: #{tpu_custom_call.1} parent=1 // pred_check
      _
    $region31: #{tpu_custom_call.1} parent=1 // pred_check_branch
      %96 = sbr.rel (0) target = $region33
    $region32: #{tpu_custom_call.1} parent=1 // pred_region
      %s98 = ssub.s32 256, 256
      %99 = vsyncadd [#allocation15], %s98
      %s101 = sshll.u32 [#allocation16], 4
      %s102 = int_to_ptr.vmem [resolvable:$true] %s101
      %104 = dma.hbm_to_vmem [thread:$0]  %s7, 256, %s102, [#allocation15]
    $region33: #{tpu_custom_call.1} parent=1 // pred_fallthru
      _
    // Predicated region
    $region34: #{tpu_custom_call.1} parent=1 // pred_check
      _
    $region35: #{tpu_custom_call.1} parent=1 // pred_check_branch
      %106 = sbr.rel (0) target = $region37
    $region36: #{tpu_custom_call.1} parent=1 // pred_region
      _
    $region37: #{tpu_custom_call.1} parent=1 // pred_fallthru
      _
    // Predicated region
    $region38: #{tpu_custom_call.1} parent=1 // pred_check
      _
    $region39: #{tpu_custom_call.1} parent=1 // pred_check_branch
      %108 = sbr.rel (0) target = $region41
    $region40: #{tpu_custom_call.1} parent=1 // pred_region
      %s110 = ssub.s32 4096, 4096
      %111 = vsyncadd [#allocation18], %s110
      %s112 = sshll.u32 [#allocation17], 4
      %s113 = int_to_ptr.vmem [resolvable:$true] %s112
      %118 = dma.hbm_to_vmem [thread:$0]  %s9, 4096, %s113, [#allocation18], 128, 128, 8
    $region41: #{tpu_custom_call.1} parent=1 // pred_fallthru
      _
    // Predicated region
    $region42: #{tpu_custom_call.1} parent=1 // pred_check
      _
    $region43: #{tpu_custom_call.1} parent=1 // pred_check_branch
      %120 = sbr.rel (0) target = $region45
    $region44: #{tpu_custom_call.1} parent=1 // pred_region
      %s122 = ssub.s32 4096, 4096
      %123 = vsyncadd [#allocation18], %s122
      %s124 = sshll.u32 [#allocation19], 4
      %s125 = int_to_ptr.vmem [resolvable:$true] %s124
      %130 = dma.hbm_to_vmem [thread:$0]  %s10, 4096, %s125, [#allocation18], 128, 128, 8
    $region45: #{tpu_custom_call.1} parent=1 // pred_fallthru
      _
    // Predicated region
    $region46: #{tpu_custom_call.1} parent=1 // pred_check
      _
    $region47: #{tpu_custom_call.1} parent=1 // pred_check_branch
      %132 = sbr.rel (0) target = $region49
    $region48: #{tpu_custom_call.1} parent=1 // pred_region
      _
    $region49: #{tpu_custom_call.1} parent=1 // pred_fallthru
      _
    // Predicated region
    $region50: #{tpu_custom_call.1} parent=1 // pred_check
      _
    $region51: #{tpu_custom_call.1} parent=1 // pred_check_branch
      %134 = sbr.rel (0) target = $region53
    $region52: #{tpu_custom_call.1} parent=1 // pred_region
      %s136 = ssub.s32 2048, 2048
      %137 = vsyncadd [#allocation21], %s136
      %s138 = sshll.u32 [#allocation20], 4
      %s139 = int_to_ptr.vmem [resolvable:$true] %s138
      %144 = dma.hbm_to_vmem [thread:$0]  %s12, 2048, %s139, [#allocation21], 128, 128, 8
    $region53: #{tpu_custom_call.1} parent=1 // pred_fallthru
      _
    // Predicated region
    $region54: #{tpu_custom_call.1} parent=1 // pred_check
      _
    $region55: #{tpu_custom_call.1} parent=1 // pred_check_branch
      %146 = sbr.rel (0) target = $region57
    $region56: #{tpu_custom_call.1} parent=1 // pred_region
      _
    $region57: #{tpu_custom_call.1} parent=1 // pred_fallthru
      _
    // Predicated region
    $region58: #{tpu_custom_call.1} parent=1 // pred_check
      _
    $region59: #{tpu_custom_call.1} parent=1 // pred_check_branch
      %148 = sbr.rel (0) target = $region61
    $region60: #{tpu_custom_call.1} parent=1 // pred_region
      %149 = dma.done [#allocation7], 16
    $region61: #{tpu_custom_call.1} parent=1 // pred_fallthru
      _
    // Predicated region
    $region62: #{tpu_custom_call.1} parent=1 // pred_check
      _
    $region63: #{tpu_custom_call.1} parent=1 // pred_check_branch
      %151 = sbr.rel (0) target = $region65
    $region64: #{tpu_custom_call.1} parent=1 // pred_region
      %152 = dma.done [#allocation8], 16
    $region65: #{tpu_custom_call.1} parent=1 // pred_fallthru
      _
    // Predicated region
    $region66: #{tpu_custom_call.1} parent=1 // pred_check
      _
    $region67: #{tpu_custom_call.1} parent=1 // pred_check_branch
      %154 = sbr.rel (0) target = $region69
    $region68: #{tpu_custom_call.1} parent=1 // pred_region
      %155 = dma.done [#allocation5], 256
    $region69: #{tpu_custom_call.1} parent=1 // pred_fallthru
      _
    // Predicated region
    $region70: #{tpu_custom_call.1} parent=1 // pred_check
      _
    $region71: #{tpu_custom_call.1} parent=1 // pred_check_branch
      %157 = sbr.rel (0) target = $region73
    $region72: #{tpu_custom_call.1} parent=1 // pred_region
      %158 = dma.done [#allocation12], 256
    $region73: #{tpu_custom_call.1} parent=1 // pred_fallthru
      _
    // Predicated region
    $region74: #{tpu_custom_call.1} parent=1 // pred_check
      _
    $region75: #{tpu_custom_call.1} parent=1 // pred_check_branch
      %160 = sbr.rel (0) target = $region77
    $region76: #{tpu_custom_call.1} parent=1 // pred_region
      %161 = dma.done [#allocation12], 2048
    $region77: #{tpu_custom_call.1} parent=1 // pred_fallthru
      _
    // Predicated region
    $region78: #{tpu_custom_call.1} parent=1 // pred_check
      _
    $region79: #{tpu_custom_call.1} parent=1 // pred_check_branch
      %163 = sbr.rel (0) target = $region81
    $region80: #{tpu_custom_call.1} parent=1 // pred_region
      %164 = dma.done [#allocation15], 4096
    $region81: #{tpu_custom_call.1} parent=1 // pred_fallthru
      _
    // Predicated region
    $region82: #{tpu_custom_call.1} parent=1 // pred_check
      _
    $region83: #{tpu_custom_call.1} parent=1 // pred_check_branch
      %166 = sbr.rel (0) target = $region85
    $region84: #{tpu_custom_call.1} parent=1 // pred_region
      %167 = dma.done [#allocation15], 256
    $region85: #{tpu_custom_call.1} parent=1 // pred_fallthru
      _
    // Predicated region
    $region86: #{tpu_custom_call.1} parent=1 // pred_check
      _
    $region87: #{tpu_custom_call.1} parent=1 // pred_check_branch
      %169 = sbr.rel (0) target = $region89
    $region88: #{tpu_custom_call.1} parent=1 // pred_region
      %170 = dma.done [#allocation18], 4096
    $region89: #{tpu_custom_call.1} parent=1 // pred_fallthru
      _
    // Predicated region
    $region90: #{tpu_custom_call.1} parent=1 // pred_check
      _
    $region91: #{tpu_custom_call.1} parent=1 // pred_check_branch
      %172 = sbr.rel (0) target = $region93
    $region92: #{tpu_custom_call.1} parent=1 // pred_region
      %173 = dma.done [#allocation18], 4096
    $region93: #{tpu_custom_call.1} parent=1 // pred_fallthru
      _
    // Predicated region
    $region94: #{tpu_custom_call.1} parent=1 // pred_check
      _
    $region95: #{tpu_custom_call.1} parent=1 // pred_check_branch
      %175 = sbr.rel (0) target = $region97
    $region96: #{tpu_custom_call.1} parent=1 // pred_region
      %176 = dma.done [#allocation21], 2048
    $region97: #{tpu_custom_call.1} parent=1 // pred_fallthru
      _
    %177 = sfence
    %v179 = vld [vmem:[#allocation10] sm:$0xf]
    %v180 = vld [vmem:[#allocation10 + $0x4] sm:$0xf]
    %v181 = vld [vmem:[#allocation10 + $0x8] sm:$0xf]
    %v182 = vld [vmem:[#allocation10 + $0xc] sm:$0xf]
    %v183 = vld [vmem:[#allocation11] sm:$0xf]
    %v184 = vld [vmem:[#allocation11 + $0x4] sm:$0xf]
    %v185 = vld [vmem:[#allocation11 + $0x8] sm:$0xf]
    %v186 = vld [vmem:[#allocation11 + $0xc] sm:$0xf]
    %v191 = vunpack.c.l.b16 %v179
    %v192 = vunpack.c.l.b16 %v180
    %v193 = vunpack.c.l.b16 %v181
    %v194 = vunpack.c.l.b16 %v182
    %v195 = vpack.c.b16 %v192, %v191
    %v196 = vpack.c.b16 %v194, %v193
    %v201 = vunpack.c.l.b16 %v183
    %v202 = vunpack.c.l.b16 %v184
    %v203 = vunpack.c.l.b16 %v185
    %v204 = vunpack.c.l.b16 %v186
    %v205 = vpack.c.b16 %v202, %v201
    %v206 = vpack.c.b16 %v204, %v203
    %vm209 = vcmask 261120
    %v211 = vsel %vm209, %v195, 0
    %v214 = vsel %vm209, %v196, 0
    %216 = vmatprep.subr.bf16.mxu0 0
    %217 = vmatpush1.bf16.msra.mxu0 %v205
    %218 = vmatprep.subr.bf16.mxu0 0
    %219 = vmatpush1.bf16.msra.mxu0 %v206
    %220 = vmatprep.subr.bf16.mxu0 0
    %221 = vmatpush1.bf16.msra.mxu0 0
    %222 = vmatprep.subr.bf16.mxu0 0
    %223 = vmatpush1.bf16.msra.mxu0 0
    %224 = vmatprep.subr.bf16.mxu0 0
    %225 = vmatpush1.bf16.msra.mxu0 0
    %226 = vmatprep.subr.bf16.mxu0 0
    %227 = vmatpush1.bf16.msra.mxu0 0
    %228 = vmatprep.subr.bf16.mxu0 0
    %229 = vmatpush1.bf16.msra.mxu0 0
    %230 = vmatprep.subr.bf16.mxu0 0
    %231 = vmatpush1.bf16.msra.mxu0 0
    %232 = vmatprep.subr.bf16.mxu0 0
    %233 = vmatpush1.bf16.msra.mxu0 0
    %234 = vmatprep.subr.bf16.mxu0 0
    %235 = vmatpush1.bf16.msra.mxu0 0
    %236 = vmatprep.subr.bf16.mxu0 0
    %237 = vmatpush1.bf16.msra.mxu0 0
    %238 = vmatprep.subr.bf16.mxu0 0
    %239 = vmatpush1.bf16.msra.mxu0 0
    %240 = vmatprep.subr.bf16.mxu0 0
    %241 = vmatpush1.bf16.msra.mxu0 0
    %242 = vmatprep.subr.bf16.mxu0 0
    %243 = vmatpush1.bf16.msra.mxu0 0
    %244 = vmatprep.subr.bf16.mxu0 0
    %245 = vmatpush1.bf16.msra.mxu0 0
    %246 = vmatprep.subr.bf16.mxu0 0
    %247 = vmatpush1.bf16.msra.mxu0 0
    %248 = vmatprep.mubr.bf16.mxu0 0
    %249 = vmatmul.mubr.bf16.gmra.mrb[0].mxu0 %v211
    %v250 = vpop.f32.mrb[0].mxu0
    %v251 = vadd.f32 0.0, %v250
    %v252 = vpop.f32.mrb[0].mxu0
    %v253 = vpop.f32.mrb[0].mxu0
    %v254 = vadd.f32 0.0, %v253
    %v255 = vpop.f32.mrb[0].mxu0
    %256 = vmatprep.mubr.bf16.mxu0 0
    %257 = vmatmul.mubr.bf16.gmra.mrb[0].mxu0 %v214
    %v258 = vpop.f32.mrb[0].mxu0
    %v259 = vadd.f32 0.0, %v258
    %v260 = vpop.f32.mrb[0].mxu0
    %v261 = vpop.f32.mrb[0].mxu0
    %v262 = vadd.f32 0.0, %v261
    %v263 = vpop.f32.mrb[0].mxu0
    %264 = vdwg.mxu0
    %v265 = vpack.c.bf16 %v254, %v251
    %v266 = vpack.c.bf16 %v262, %v259
    %v267 = vld [vmem:[#allocation13] sm:$0xff]
    %v268 = vld [vmem:[#allocation13 + $0x8] sm:$0xff]
    %v269 = vld [vmem:[#allocation13 + $0x10] sm:$0xff]
    %v270 = vld [vmem:[#allocation13 + $0x18] sm:$0xff]
    %v271 = vld [vmem:[#allocation13 + $0x20] sm:$0xff]
    %v272 = vld [vmem:[#allocation13 + $0x28] sm:$0xff]
    %v273 = vld [vmem:[#allocation13 + $0x30] sm:$0xff]
    %v274 = vld [vmem:[#allocation13 + $0x38] sm:$0xff]
    %v275 = vld [vmem:[#allocation13 + $0x40] sm:$0xff]
    %v276 = vld [vmem:[#allocation13 + $0x48] sm:$0xff]
    %v277 = vld [vmem:[#allocation13 + $0x50] sm:$0xff]
    %v278 = vld [vmem:[#allocation13 + $0x58] sm:$0xff]
    %v279 = vld [vmem:[#allocation13 + $0x60] sm:$0xff]
    %v280 = vld [vmem:[#allocation13 + $0x68] sm:$0xff]
    %v281 = vld [vmem:[#allocation13 + $0x70] sm:$0xff]
    %v282 = vld [vmem:[#allocation13 + $0x78] sm:$0xff]
    %v283 = vld [vmem:[%s6] ss:$8 sm:$0x3]
    %v285 = vlaneseq
    %v286 = vshrl.u32 %v285, 7
    %v287 = vsub.s32 0, %v286
    %v288 = vrot.slane %v283, %v287
    %v289 = vlaneseq
    %v290 = vshrl.u32 %v289, 7
    %v291 = vsub.s32 1, %v290
    %v292 = vrot.slane %v283, %v291
    %v311 = vunpack.c.l.b16 %v267
    %v312 = vunpack.c.h.b16 %v267
    %v313 = vunpack.c.l.b16 %v268
    %v314 = vunpack.c.h.b16 %v268
    %v315 = vunpack.c.l.b16 %v269
    %v316 = vunpack.c.h.b16 %v269
    %v317 = vunpack.c.l.b16 %v270
    %v318 = vunpack.c.h.b16 %v270
    %v319 = vunpack.c.l.b16 %v271
    %v320 = vunpack.c.h.b16 %v271
    %v321 = vunpack.c.l.b16 %v272
    %v322 = vunpack.c.h.b16 %v272
    %v323 = vunpack.c.l.b16 %v273
    %v324 = vunpack.c.h.b16 %v273
    %v325 = vunpack.c.l.b16 %v274
    %v326 = vunpack.c.h.b16 %v274
    %v327 = vunpack.c.l.b16 %v275
    %v328 = vunpack.c.h.b16 %v275
    %v329 = vunpack.c.l.b16 %v276
    %v330 = vunpack.c.h.b16 %v276
    %v331 = vunpack.c.l.b16 %v277
    %v332 = vunpack.c.h.b16 %v277
    %v333 = vunpack.c.l.b16 %v278
    %v334 = vunpack.c.h.b16 %v278
    %v335 = vunpack.c.l.b16 %v279
    %v336 = vunpack.c.h.b16 %v279
    %v337 = vunpack.c.l.b16 %v280
    %v338 = vunpack.c.h.b16 %v280
    %v339 = vunpack.c.l.b16 %v281
    %v340 = vunpack.c.h.b16 %v281
    %v341 = vunpack.c.l.b16 %v282
    %v342 = vunpack.c.h.b16 %v282
    %v343 = vpack.c.b16 %v313, %v311
    %v344 = vpack.c.b16 %v314, %v312
    %v345 = vpack.c.b16 %v317, %v315
    %v346 = vpack.c.b16 %v318, %v316
    %v347 = vpack.c.b16 %v321, %v319
    %v348 = vpack.c.b16 %v322, %v320
    %v349 = vpack.c.b16 %v325, %v323
    %v350 = vpack.c.b16 %v326, %v324
    %v351 = vpack.c.b16 %v329, %v327
    %v352 = vpack.c.b16 %v330, %v328
    %v353 = vpack.c.b16 %v333, %v331
    %v354 = vpack.c.b16 %v334, %v332
    %v355 = vpack.c.b16 %v337, %v335
    %v356 = vpack.c.b16 %v338, %v336
    %v357 = vpack.c.b16 %v341, %v339
    %v358 = vpack.c.b16 %v342, %v340
    %375 = vmatprep.subr.bf16.mxu0 %v344
    %376 = vmatpush1.bf16.msra.mxu0 %v343
    %377 = vmatprep.subr.bf16.mxu0 %v346
    %378 = vmatpush1.bf16.msra.mxu0 %v345
    %379 = vmatprep.subr.bf16.mxu0 %v348
    %380 = vmatpush1.bf16.msra.mxu0 %v347
    %381 = vmatprep.subr.bf16.mxu0 %v350
    %382 = vmatpush1.bf16.msra.mxu0 %v349
    %383 = vmatprep.subr.bf16.mxu0 %v352
    %384 = vmatpush1.bf16.msra.mxu0 %v351
    %385 = vmatprep.subr.bf16.mxu0 %v354
    %386 = vmatpush1.bf16.msra.mxu0 %v353
    %387 = vmatprep.subr.bf16.mxu0 %v356
    %388 = vmatpush1.bf16.msra.mxu0 %v355
    %389 = vmatprep.subr.bf16.mxu0 %v358
    %390 = vmatpush1.bf16.msra.mxu0 %v357
    %391 = vmatprep.subr.bf16.mxu0 0
    %392 = vmatpush1.bf16.msra.mxu0 0
    %393 = vmatprep.subr.bf16.mxu0 0
    %394 = vmatpush1.bf16.msra.mxu0 0
    %395 = vmatprep.subr.bf16.mxu0 0
    %396 = vmatpush1.bf16.msra.mxu0 0
    %397 = vmatprep.subr.bf16.mxu0 0
    %398 = vmatpush1.bf16.msra.mxu0 0
    %399 = vmatprep.subr.bf16.mxu0 0
    %400 = vmatpush1.bf16.msra.mxu0 0
    %401 = vmatprep.subr.bf16.mxu0 0
    %402 = vmatpush1.bf16.msra.mxu0 0
    %403 = vmatprep.subr.bf16.mxu0 0
    %404 = vmatpush1.bf16.msra.mxu0 0
    %405 = vmatprep.subr.bf16.mxu0 0
    %406 = vmatpush1.bf16.msra.mxu0 0
    %407 = vmatprep.mubr.bf16.mxu0 0
    %408 = vmatmul.mubr.bf16.gmra.mrb[0].mxu0 %v265
    %v409 = vpop.f32.mrb[0].mxu0
    %v410 = vadd.f32 %v288, %v409
    %v411 = vpop.f32.mrb[0].mxu0
    %v412 = vadd.f32 %v292, %v411
    %v413 = vpop.f32.mrb[0].mxu0
    %v414 = vadd.f32 %v288, %v413
    %v415 = vpop.f32.mrb[0].mxu0
    %v416 = vadd.f32 %v292, %v415
    %417 = vmatprep.mubr.bf16.mxu0 0
    %418 = vmatmul.mubr.bf16.gmra.mrb[0].mxu0 %v266
    %v419 = vpop.f32.mrb[0].mxu0
    %v420 = vadd.f32 %v288, %v419
    %v421 = vpop.f32.mrb[0].mxu0
    %v422 = vadd.f32 %v292, %v421
    %v423 = vpop.f32.mrb[0].mxu0
    %v424 = vadd.f32 %v288, %v423
    %v425 = vpop.f32.mrb[0].mxu0
    %v426 = vadd.f32 %v292, %v425
    %427 = vdwg.mxu0
    %v428 = vmax.f32 %v410, 0.0
    %v429 = vmax.f32 %v412, 0.0
    %v430 = vmax.f32 %v414, 0.0
    %v431 = vmax.f32 %v416, 0.0
    %v432 = vmax.f32 %v420, 0.0
    %v433 = vmax.f32 %v422, 0.0
    %v434 = vmax.f32 %v424, 0.0
    %v435 = vmax.f32 %v426, 0.0
    %s436 = scalar_lea.vmem %s6, 1
    %v437 = vld [vmem:[%s436] ss:$8 sm:$0x3]
    %v439 = vlaneseq
    %v440 = vshrl.u32 %v439, 7
    %v441 = vsub.s32 0, %v440
    %v442 = vrot.slane %v437, %v441
    %v443 = vlaneseq
    %v444 = vshrl.u32 %v443, 7
    %v445 = vsub.s32 1, %v444
    %v446 = vrot.slane %v437, %v445
    %v449 = vmul.f32 %v428, %v442
    %v450 = vmul.f32 %v429, %v446
    %v451 = vmul.f32 %v430, %v442
    %v452 = vmul.f32 %v431, %v446
    %v453 = vmul.f32 %v432, %v442
    %v454 = vmul.f32 %v433, %v446
    %v455 = vmul.f32 %v434, %v442
    %v456 = vmul.f32 %v435, %v446
    %s457 = scalar_lea.vmem %s6, 2
    %v458 = vld [vmem:[%s457] ss:$8 sm:$0x3]
    %v460 = vlaneseq
    %v461 = vshrl.u32 %v460, 7
    %v462 = vsub.s32 0, %v461
    %v463 = vrot.slane %v458, %v462
    %v464 = vlaneseq
    %v465 = vshrl.u32 %v464, 7
    %v466 = vsub.s32 1, %v465
    %v467 = vrot.slane %v458, %v466
    %v470 = vadd.f32 %v449, %v463
    %v471 = vadd.f32 %v450, %v467
    %v472 = vadd.f32 %v451, %v463
    %v473 = vadd.f32 %v452, %v467
    %v474 = vadd.f32 %v453, %v463
    %v475 = vadd.f32 %v454, %v467
    %v476 = vadd.f32 %v455, %v463
    %v477 = vadd.f32 %v456, %v467
    %v478 = vpack.c.bf16 %v472, %v470
    %v479 = vpack.c.bf16 %v473, %v471
    %v480 = vpack.c.bf16 %v476, %v474
    %v481 = vpack.c.bf16 %v477, %v475
    %v482 = vld [vmem:[#allocation14] sm:$0xff]
    %v483 = vld [vmem:[#allocation14 + $0x8] sm:$0xff]
    %v484 = vld [vmem:[#allocation14 + $0x10] sm:$0xff]
    %v485 = vld [vmem:[#allocation14 + $0x18] sm:$0xff]
    %v486 = vld [vmem:[#allocation14 + $0x20] sm:$0xff]
    %v487 = vld [vmem:[#allocation14 + $0x28] sm:$0xff]
    %v488 = vld [vmem:[#allocation14 + $0x30] sm:$0xff]
    %v489 = vld [vmem:[#allocation14 + $0x38] sm:$0xff]
    %v490 = vld [vmem:[#allocation14 + $0x40] sm:$0xff]
    %v491 = vld [vmem:[#allocation14 + $0x48] sm:$0xff]
    %v492 = vld [vmem:[#allocation14 + $0x50] sm:$0xff]
    %v493 = vld [vmem:[#allocation14 + $0x58] sm:$0xff]
    %v494 = vld [vmem:[#allocation14 + $0x60] sm:$0xff]
    %v495 = vld [vmem:[#allocation14 + $0x68] sm:$0xff]
    %v496 = vld [vmem:[#allocation14 + $0x70] sm:$0xff]
    %v497 = vld [vmem:[#allocation14 + $0x78] sm:$0xff]
    %v498 = vld [vmem:[#allocation14 + $0x80] sm:$0xff]
    %v499 = vld [vmem:[#allocation14 + $0x88] sm:$0xff]
    %v500 = vld [vmem:[#allocation14 + $0x90] sm:$0xff]
    %v501 = vld [vmem:[#allocation14 + $0x98] sm:$0xff]
    %v502 = vld [vmem:[#allocation14 + $0xa0] sm:$0xff]
    %v503 = vld [vmem:[#allocation14 + $0xa8] sm:$0xff]
    %v504 = vld [vmem:[#allocation14 + $0xb0] sm:$0xff]
    %v505 = vld [vmem:[#allocation14 + $0xb8] sm:$0xff]
    %v506 = vld [vmem:[#allocation14 + $0xc0] sm:$0xff]
    %v507 = vld [vmem:[#allocation14 + $0xc8] sm:$0xff]
    %v508 = vld [vmem:[#allocation14 + $0xd0] sm:$0xff]
    %v509 = vld [vmem:[#allocation14 + $0xd8] sm:$0xff]
    %v510 = vld [vmem:[#allocation14 + $0xe0] sm:$0xff]
    %v511 = vld [vmem:[#allocation14 + $0xe8] sm:$0xff]
    %v512 = vld [vmem:[#allocation14 + $0xf0] sm:$0xff]
    %v513 = vld [vmem:[#allocation14 + $0xf8] sm:$0xff]
    %v546 = vunpack.c.l.b16 %v482
    %v547 = vunpack.c.h.b16 %v482
    %v548 = vunpack.c.l.b16 %v483
    %v549 = vunpack.c.h.b16 %v483
    %v550 = vunpack.c.l.b16 %v484
    %v551 = vunpack.c.h.b16 %v484
    %v552 = vunpack.c.l.b16 %v485
    %v553 = vunpack.c.h.b16 %v485
    %v554 = vunpack.c.l.b16 %v486
    %v555 = vunpack.c.h.b16 %v486
    %v556 = vunpack.c.l.b16 %v487
    %v557 = vunpack.c.h.b16 %v487
    %v558 = vunpack.c.l.b16 %v488
    %v559 = vunpack.c.h.b16 %v488
    %v560 = vunpack.c.l.b16 %v489
    %v561 = vunpack.c.h.b16 %v489
    %v562 = vunpack.c.l.b16 %v490
    %v563 = vunpack.c.h.b16 %v490
    %v564 = vunpack.c.l.b16 %v491
    %v565 = vunpack.c.h.b16 %v491
    %v566 = vunpack.c.l.b16 %v492
    %v567 = vunpack.c.h.b16 %v492
    %v568 = vunpack.c.l.b16 %v493
    %v569 = vunpack.c.h.b16 %v493
    %v570 = vunpack.c.l.b16 %v494
    %v571 = vunpack.c.h.b16 %v494
    %v572 = vunpack.c.l.b16 %v495
    %v573 = vunpack.c.h.b16 %v495
    %v574 = vunpack.c.l.b16 %v496
    %v575 = vunpack.c.h.b16 %v496
    %v576 = vunpack.c.l.b16 %v497
    %v577 = vunpack.c.h.b16 %v497
    %v578 = vunpack.c.l.b16 %v498
    %v579 = vunpack.c.h.b16 %v498
    %v580 = vunpack.c.l.b16 %v499
    %v581 = vunpack.c.h.b16 %v499
    %v582 = vunpack.c.l.b16 %v500
    %v583 = vunpack.c.h.b16 %v500
    %v584 = vunpack.c.l.b16 %v501
    %v585 = vunpack.c.h.b16 %v501
    %v586 = vunpack.c.l.b16 %v502
    %v587 = vunpack.c.h.b16 %v502
    %v588 = vunpack.c.l.b16 %v503
    %v589 = vunpack.c.h.b16 %v503
    %v590 = vunpack.c.l.b16 %v504
    %v591 = vunpack.c.h.b16 %v504
    %v592 = vunpack.c.l.b16 %v505
    %v593 = vunpack.c.h.b16 %v505
    %v594 = vunpack.c.l.b16 %v506
    %v595 = vunpack.c.h.b16 %v506
    %v596 = vunpack.c.l.b16 %v507
    %v597 = vunpack.c.h.b16 %v507
    %v598 = vunpack.c.l.b16 %v508
    %v599 = vunpack.c.h.b16 %v508
    %v600 = vunpack.c.l.b16 %v509
    %v601 = vunpack.c.h.b16 %v509
    %v602 = vunpack.c.l.b16 %v510
    %v603 = vunpack.c.h.b16 %v510
    %v604 = vunpack.c.l.b16 %v511
    %v605 = vunpack.c.h.b16 %v511
    %v606 = vunpack.c.l.b16 %v512
    %v607 = vunpack.c.h.b16 %v512
    %v608 = vunpack.c.l.b16 %v513
    %v609 = vunpack.c.h.b16 %v513
    %v610 = vpack.c.b16 %v548, %v546
    %v611 = vpack.c.b16 %v549, %v547
    %v612 = vpack.c.b16 %v552, %v550
    %v613 = vpack.c.b16 %v553, %v551
    %v614 = vpack.c.b16 %v556, %v554
    %v615 = vpack.c.b16 %v557, %v555
    %v616 = vpack.c.b16 %v560, %v558
    %v617 = vpack.c.b16 %v561, %v559
    %v618 = vpack.c.b16 %v564, %v562
    %v619 = vpack.c.b16 %v565, %v563
    %v620 = vpack.c.b16 %v568, %v566
    %v621 = vpack.c.b16 %v569, %v567
    %v622 = vpack.c.b16 %v572, %v570
    %v623 = vpack.c.b16 %v573, %v571
    %v624 = vpack.c.b16 %v576, %v574
    %v625 = vpack.c.b16 %v577, %v575
    %v626 = vpack.c.b16 %v580, %v578
    %v627 = vpack.c.b16 %v581, %v579
    %v628 = vpack.c.b16 %v584, %v582
    %v629 = vpack.c.b16 %v585, %v583
    %v630 = vpack.c.b16 %v588, %v586
    %v631 = vpack.c.b16 %v589, %v587
    %v632 = vpack.c.b16 %v592, %v590
    %v633 = vpack.c.b16 %v593, %v591
    %v634 = vpack.c.b16 %v596, %v594
    %v635 = vpack.c.b16 %v597, %v595
    %v636 = vpack.c.b16 %v600, %v598
    %v637 = vpack.c.b16 %v601, %v599
    %v638 = vpack.c.b16 %v604, %v602
    %v639 = vpack.c.b16 %v605, %v603
    %v640 = vpack.c.b16 %v608, %v606
    %v641 = vpack.c.b16 %v609, %v607
    %674 = vmatprep.subr.bf16.mxu0 %v611
    %675 = vmatpush1.bf16.msra.mxu0 %v610
    %676 = vmatprep.subr.bf16.mxu0 %v613
    %677 = vmatpush1.bf16.msra.mxu0 %v612
    %678 = vmatprep.subr.bf16.mxu0 %v615
    %679 = vmatpush1.bf16.msra.mxu0 %v614
    %680 = vmatprep.subr.bf16.mxu0 %v617
    %681 = vmatpush1.bf16.msra.mxu0 %v616
    %682 = vmatprep.subr.bf16.mxu0 %v619
    %683 = vmatpush1.bf16.msra.mxu0 %v618
    %684 = vmatprep.subr.bf16.mxu0 %v621
    %685 = vmatpush1.bf16.msra.mxu0 %v620
    %686 = vmatprep.subr.bf16.mxu0 %v623
    %687 = vmatpush1.bf16.msra.mxu0 %v622
    %688 = vmatprep.subr.bf16.mxu0 %v625
    %689 = vmatpush1.bf16.msra.mxu0 %v624
    %690 = vmatprep.subr.bf16.mxu0 %v627
    %691 = vmatpush1.bf16.msra.mxu0 %v626
    %692 = vmatprep.subr.bf16.mxu0 %v629
    %693 = vmatpush1.bf16.msra.mxu0 %v628
    %694 = vmatprep.subr.bf16.mxu0 %v631
    %695 = vmatpush1.bf16.msra.mxu0 %v630
    %696 = vmatprep.subr.bf16.mxu0 %v633
    %697 = vmatpush1.bf16.msra.mxu0 %v632
    %698 = vmatprep.subr.bf16.mxu0 %v635
    %699 = vmatpush1.bf16.msra.mxu0 %v634
    %700 = vmatprep.subr.bf16.mxu0 %v637
    %701 = vmatpush1.bf16.msra.mxu0 %v636
    %702 = vmatprep.subr.bf16.mxu0 %v639
    %703 = vmatpush1.bf16.msra.mxu0 %v638
    %704 = vmatprep.subr.bf16.mxu0 %v641
    %705 = vmatpush1.bf16.msra.mxu0 %v640
    %706 = vmatprep.mubr.bf16.mxu0 %v479
    %707 = vmatmul.mubr.bf16.gmra.mrb[0].mxu0 %v478
    %v708 = vpop.f32.mrb[0].mxu0
    %v709 = vadd.f32 0.0, %v708
    %v710 = vpop.f32.mrb[0].mxu0
    %v711 = vadd.f32 0.0, %v710
    %v712 = vpop.f32.mrb[0].mxu0
    %v713 = vadd.f32 0.0, %v712
    %v714 = vpop.f32.mrb[0].mxu0
    %v715 = vadd.f32 0.0, %v714
    %716 = vmatprep.mubr.bf16.mxu0 %v481
    %717 = vmatmul.mubr.bf16.gmra.mrb[0].mxu0 %v480
    %v718 = vpop.f32.mrb[0].mxu0
    %v719 = vadd.f32 0.0, %v718
    %v720 = vpop.f32.mrb[0].mxu0
    %v721 = vadd.f32 0.0, %v720
    %v722 = vpop.f32.mrb[0].mxu0
    %v723 = vadd.f32 0.0, %v722
    %v724 = vpop.f32.mrb[0].mxu0
    %v725 = vadd.f32 0.0, %v724
    %726 = vdwg.mxu0
    %v727 = vpack.c.bf16 %v713, %v709
    %v728 = vpack.c.bf16 %v715, %v711
    %v729 = vpack.c.bf16 %v723, %v719
    %v730 = vpack.c.bf16 %v725, %v721
    %v731 = vld [vmem:[#allocation16] ss:$8 sm:$0x3]
    %v733 = vlaneseq
    %v734 = vshrl.u32 %v733, 7
    %v735 = vsub.s32 0, %v734
    %v736 = vrot.slane %v731, %v735
    %v737 = vlaneseq
    %v738 = vshrl.u32 %v737, 7
    %v739 = vsub.s32 1, %v738
    %v740 = vrot.slane %v731, %v739
    %743 = vmatprep.subr.bf16.mxu0 %v728
    %744 = vmatpush1.bf16.msra.mxu0 %v727
    %745 = vmatprep.subr.bf16.mxu0 %v730
    %746 = vmatpush1.bf16.msra.mxu0 %v729
    %747 = vmatprep.subr.bf16.mxu0 0
    %748 = vmatpush1.bf16.msra.mxu0 0
    %749 = vmatprep.subr.bf16.mxu0 0
    %750 = vmatpush1.bf16.msra.mxu0 0
    %751 = vmatprep.subr.bf16.mxu0 0
    %752 = vmatpush1.bf16.msra.mxu0 0
    %753 = vmatprep.subr.bf16.mxu0 0
    %754 = vmatpush1.bf16.msra.mxu0 0
    %755 = vmatprep.subr.bf16.mxu0 0
    %756 = vmatpush1.bf16.msra.mxu0 0
    %757 = vmatprep.subr.bf16.mxu0 0
    %758 = vmatpush1.bf16.msra.mxu0 0
    %759 = vmatprep.subr.bf16.mxu0 0
    %760 = vmatpush1.bf16.msra.mxu0 0
    %761 = vmatprep.subr.bf16.mxu0 0
    %762 = vmatpush1.bf16.msra.mxu0 0
    %763 = vmatprep.subr.bf16.mxu0 0
    %764 = vmatpush1.bf16.msra.mxu0 0
    %765 = vmatprep.subr.bf16.mxu0 0
    %766 = vmatpush1.bf16.msra.mxu0 0
    %767 = vmatprep.subr.bf16.mxu0 0
    %768 = vmatpush1.bf16.msra.mxu0 0
    %769 = vmatprep.subr.bf16.mxu0 0
    %770 = vmatpush1.bf16.msra.mxu0 0
    %771 = vmatprep.subr.bf16.mxu0 0
    %772 = vmatpush1.bf16.msra.mxu0 0
    %773 = vmatprep.subr.bf16.mxu0 0
    %774 = vmatpush1.bf16.msra.mxu0 0
    %775 = vmatprep.mubr.bf16.mxu0 0
    %776 = vmatmul.mubr.bf16.gmra.mrb[0].mxu0 %v211
    %v777 = vpop.f32.mrb[0].mxu0
    %v778 = vadd.f32 %v736, %v777
    %v779 = vpop.f32.mrb[0].mxu0
    %v780 = vadd.f32 %v740, %v779
    %v781 = vpop.f32.mrb[0].mxu0
    %v782 = vadd.f32 %v736, %v781
    %v783 = vpop.f32.mrb[0].mxu0
    %v784 = vadd.f32 %v740, %v783
    %785 = vmatprep.mubr.bf16.mxu0 0
    %786 = vmatmul.mubr.bf16.gmra.mrb[0].mxu0 %v214
    %v787 = vpop.f32.mrb[0].mxu0
    %v788 = vadd.f32 %v736, %v787
    %v789 = vpop.f32.mrb[0].mxu0
    %v790 = vadd.f32 %v740, %v789
    %v791 = vpop.f32.mrb[0].mxu0
    %v792 = vadd.f32 %v736, %v791
    %v793 = vpop.f32.mrb[0].mxu0
    %v794 = vadd.f32 %v740, %v793
    %795 = vdwg.mxu0
    %v796 = vmax.f32 %v778, 0.0
    %v797 = vmax.f32 %v780, 0.0
    %v798 = vmax.f32 %v782, 0.0
    %v799 = vmax.f32 %v784, 0.0
    %v800 = vmax.f32 %v788, 0.0
    %v801 = vmax.f32 %v790, 0.0
    %v802 = vmax.f32 %v792, 0.0
    %v803 = vmax.f32 %v794, 0.0
    %s804 = scalar_lea.vmem [#allocation16], 1
    %v805 = vld [vmem:[%s804] ss:$8 sm:$0x3]
    %v807 = vlaneseq
    %v808 = vshrl.u32 %v807, 7
    %v809 = vsub.s32 0, %v808
    %v810 = vrot.slane %v805, %v809
    %v811 = vlaneseq
    %v812 = vshrl.u32 %v811, 7
    %v813 = vsub.s32 1, %v812
    %v814 = vrot.slane %v805, %v813
    %v817 = vmul.f32 %v796, %v810
    %v818 = vmul.f32 %v797, %v814
    %v819 = vmul.f32 %v798, %v810
    %v820 = vmul.f32 %v799, %v814
    %v821 = vmul.f32 %v800, %v810
    %v822 = vmul.f32 %v801, %v814
    %v823 = vmul.f32 %v802, %v810
    %v824 = vmul.f32 %v803, %v814
    %s825 = scalar_lea.vmem [#allocation16], 2
    %v826 = vld [vmem:[%s825] ss:$8 sm:$0x3]
    %v828 = vlaneseq
    %v829 = vshrl.u32 %v828, 7
    %v830 = vsub.s32 0, %v829
    %v831 = vrot.slane %v826, %v830
    %v832 = vlaneseq
    %v833 = vshrl.u32 %v832, 7
    %v834 = vsub.s32 1, %v833
    %v835 = vrot.slane %v826, %v834
    %v838 = vadd.f32 %v817, %v831
    %v839 = vadd.f32 %v818, %v835
    %v840 = vadd.f32 %v819, %v831
    %v841 = vadd.f32 %v820, %v835
    %v842 = vadd.f32 %v821, %v831
    %v843 = vadd.f32 %v822, %v835
    %v844 = vadd.f32 %v823, %v831
    %v845 = vadd.f32 %v824, %v835
    %v846 = vld [vmem:[%s8] sm:$0xff]
    %v848 = vsel %vm209, %v846, 0
    %850 = vmatprep.subr.mxu0 %v839
    %851 = vmatpush1.msra.mxu0 %v838
    %852 = vmatprep.subr.mxu0 %v841
    %853 = vmatpush1.msra.mxu0 %v840
    %854 = vmatprep.subr.mxu0 %v843
    %855 = vmatpush1.msra.mxu0 %v842
    %856 = vmatprep.subr.mxu0 %v845
    %857 = vmatpush1.msra.mxu0 %v844
    %858 = vmatprep.subr.mxu0 0.0
    %859 = vmatpush1.msra.mxu0 0.0
    %860 = vmatprep.subr.mxu0 0.0
    %861 = vmatpush1.msra.mxu0 0.0
    %862 = vmatprep.subr.mxu0 0.0
    %863 = vmatpush1.msra.mxu0 0.0
    %864 = vmatprep.subr.mxu0 0.0
    %865 = vmatpush1.msra.mxu0 0.0
    %866 = vmatprep.subr.mxu0 0.0
    %867 = vmatpush1.msra.mxu0 0.0
    %868 = vmatprep.subr.mxu0 0.0
    %869 = vmatpush1.msra.mxu0 0.0
    %870 = vmatprep.subr.mxu0 0.0
    %871 = vmatpush1.msra.mxu0 0.0
    %872 = vmatprep.subr.mxu0 0.0
    %873 = vmatpush1.msra.mxu0 0.0
    %874 = vmatprep.subr.mxu0 0.0
    %875 = vmatpush1.msra.mxu0 0.0
    %876 = vmatprep.subr.mxu0 0.0
    %877 = vmatpush1.msra.mxu0 0.0
    %878 = vmatprep.subr.mxu0 0.0
    %879 = vmatpush1.msra.mxu0 0.0
    %880 = vmatprep.subr.mxu0 0.0
    %881 = vmatpush1.msra.mxu0 0.0
    %882 = vmatprep.subr.mxu0 0.0
    %883 = vmatpush1.msra.mxu0 0.0
    %884 = vmatprep.subr.mxu0 0.0
    %885 = vmatpush1.msra.mxu0 0.0
    %886 = vmatprep.subr.mxu0 0.0
    %887 = vmatpush1.msra.mxu0 0.0
    %888 = vmatprep.subr.mxu0 0.0
    %889 = vmatpush1.msra.mxu0 0.0
    %890 = vmatprep.subr.mxu0 0.0
    %891 = vmatpush1.msra.mxu0 0.0
    %892 = vmatprep.subr.mxu0 0.0
    %893 = vmatpush1.msra.mxu0 0.0
    %894 = vmatprep.subr.mxu0 0.0
    %895 = vmatpush1.msra.mxu0 0.0
    %896 = vmatprep.subr.mxu0 0.0
    %897 = vmatpush1.msra.mxu0 0.0
    %898 = vmatprep.subr.mxu0 0.0
    %899 = vmatpush1.msra.mxu0 0.0
    %900 = vmatprep.subr.mxu0 0.0
    %901 = vmatpush1.msra.mxu0 0.0
    %902 = vmatprep.subr.mxu0 0.0
    %903 = vmatpush1.msra.mxu0 0.0
    %904 = vmatprep.subr.mxu0 0.0
    %905 = vmatpush1.msra.mxu0 0.0
    %906 = vmatprep.subr.mxu0 0.0
    %907 = vmatpush1.msra.mxu0 0.0
    %908 = vmatprep.subr.mxu0 0.0
    %909 = vmatpush1.msra.mxu0 0.0
    %910 = vmatprep.subr.mxu0 0.0
    %911 = vmatpush1.msra.mxu0 0.0
    %912 = vmatprep.subr.mxu0 0.0
    %913 = vmatpush1.msra.mxu0 0.0
    %914 = vmatprep.mubr.f32.mxu0 0.0
    %915 = vmatmul.mubr.f32.gmra.mrb[0].mxu0 %v848
    %v916 = vpop.f32.mrb[0].mxu0
    %v917 = vadd.f32 0.0, %v916
    %v918 = vpop.f32.mrb[0].mxu0
    %v919 = vadd.f32 0.0, %v918
    %920 = vdwg.mxu0
    %921 = vst [vmem:[#allocation2] sm:$0xff] %v838
    %922 = vst [vmem:[#allocation2 + $0x8] sm:$0xff] %v839
    %923 = vst [vmem:[#allocation2 + $0x10] sm:$0xff] %v840
    %924 = vst [vmem:[#allocation2 + $0x18] sm:$0xff] %v841
    %925 = vst [vmem:[#allocation2 + $0x20] sm:$0xff] %v842
    %926 = vst [vmem:[#allocation2 + $0x28] sm:$0xff] %v843
    %927 = vst [vmem:[#allocation2 + $0x30] sm:$0xff] %v844
    %928 = vst [vmem:[#allocation2 + $0x38] sm:$0xff] %v845
    %929 = vst [vmem:[#allocation3] sm:$0xff] 0.0
    %930 = vst [vmem:[#allocation3 + $0x8] sm:$0xff] 0.0
    %v931 = vlaneseq
    %v932 = vshrl.u32 %v931, 7
    %s933 = sld [smem:[#allocation4]]
    %s934 = sld [smem:[#allocation9]]
    %s935 = sshra.s32 %s933, 3
    %s936 = sand.u32 %s933, 7
    %s937 = smul.u32 %s935, 2
    %s938 = smul.addr %s937, 8
    %s939 = scalar_lea.vmem [#allocation2], %s938
    %v940 = vld [vmem:[%s939] sm:$0xff]
    %v941 = vld [vmem:[%s939 + $0x8] sm:$0xff]
    %v942 = vstv %s934
    %vm943 = vcmp.lt.s32.totalorder %v932, %v942
    %v944 = vsel %vm943, 1, 0
    %vm945 = vcmp.eq.s32.totalorder %v944, 1
    %v946 = vsel %vm945, %v940, -1e+30
    %v947 = vsel %vm945, %v941, -1e+30
    %v948 = vrot.slane %v946, 4
    %v949 = vmax.f32 %v946, %v948
    %v950 = vrot.slane %v949, 2
    %v951 = vmax.f32 %v949, %v950
    %v952 = vrot.slane %v951, 1
    %v953 = vmax.f32 %v951, %v952
    %v954 = vrot.slane %v947, 4
    %v955 = vmax.f32 %v947, %v954
    %v956 = vrot.slane %v955, 2
    %v957 = vmax.f32 %v955, %v956
    %v958 = vrot.slane %v957, 1
    %v959 = vmax.f32 %v957, %v958
    %v962 = vcombine.low %v953, %v959
    %v964 = vunpack.c.l.s4 1966171168
    %v965 = vunpack.c.0.s8 %v964
    %v966 = vlaneseq
    %v967 = vshrl.u32 %v966, 7
    %v968 = vsub.s32 %v965, %v967
    %v969 = vrot.slane %v962, %v968
    %v971 = vunpack.c.l.s4 1966171168
    %v972 = vunpack.c.0.s8 %v971
    %v973 = vlaneseq
    %v974 = vshrl.u32 %v973, 7
    %v975 = vsub.s32 %v972, %v974
    %v976 = vrot.slane %v969, %v975
    %v978 = vlaneseq
    %vm979 = vcmp.ge.s32.totalorder %v978, 0
    %vm980 = vcmp.lt.s32.totalorder %v978, 256
    %vm981 = vmand %vm979, %vm980
    %982 = vst.msk [vmem:[#allocation3] ss:$8 sm:$0x3] %vm981, %v976
    %983 = vst.msk [vmem:[#allocation3] ss:$8 sm:$0x0] %vm981, %v976
    %s984 = sld [smem:[#allocation4 + $0x1]]
    %s985 = sld [smem:[#allocation9 + $0x1]]
    %s986 = sshra.s32 %s984, 3
    %s987 = sand.u32 %s984, 7
    %s988 = smul.u32 %s986, 2
    %s989 = smul.addr %s988, 8
    %s990 = scalar_lea.vmem [#allocation2], %s989
    %v991 = vld [vmem:[%s990] sm:$0xff]
    %v992 = vld [vmem:[%s990 + $0x8] sm:$0xff]
    %v993 = vstv %s985
    %vm994 = vcmp.lt.s32.totalorder %v932, %v993
    %v995 = vsel %vm994, 1, 0
    %vm996 = vcmp.eq.s32.totalorder %v995, 1
    %v997 = vsel %vm996, %v991, -1e+30
    %v998 = vsel %vm996, %v992, -1e+30
    %v999 = vrot.slane %v997, 4
    %v1000 = vmax.f32 %v997, %v999
    %v1001 = vrot.slane %v1000, 2
    %v1002 = vmax.f32 %v1000, %v1001
    %v1003 = vrot.slane %v1002, 1
    %v1004 = vmax.f32 %v1002, %v1003
    %v1005 = vrot.slane %v998, 4
    %v1006 = vmax.f32 %v998, %v1005
    %v1007 = vrot.slane %v1006, 2
    %v1008 = vmax.f32 %v1006, %v1007
    %v1009 = vrot.slane %v1008, 1
    %v1010 = vmax.f32 %v1008, %v1009
    %v1013 = vcombine.low %v1004, %v1010
    %v1015 = vunpack.c.l.s4 1966171168
    %v1016 = vunpack.c.0.s8 %v1015
    %v1017 = vlaneseq
    %v1018 = vshrl.u32 %v1017, 7
    %v1019 = vsub.s32 %v1016, %v1018
    %v1020 = vrot.slane %v1013, %v1019
    %v1022 = vunpack.c.l.s4 1966171168
    %v1023 = vunpack.c.0.s8 %v1022
    %v1024 = vlaneseq
    %v1025 = vshrl.u32 %v1024, 7
    %v1026 = vsub.s32 %v1023, %v1025
    %v1027 = vrot.slane %v1020, %v1026
    %s1029 = scalar_lea.vmem [#allocation3], 1
    %1030 = vst.msk [vmem:[%s1029] ss:$8 sm:$0x3] %vm981, %v1027
    %1031 = vst.msk [vmem:[%s1029] ss:$8 sm:$0x0] %vm981, %v1027
    %s1032 = sld [smem:[#allocation4 + $0x2]]
    %s1033 = sld [smem:[#allocation9 + $0x2]]
    %s1034 = sshra.s32 %s1032, 3
    %s1035 = sand.u32 %s1032, 7
    %s1036 = smul.u32 %s1034, 2
    %s1037 = smul.addr %s1036, 8
    %s1038 = scalar_lea.vmem [#allocation2], %s1037
    %v1039 = vld [vmem:[%s1038] sm:$0xff]
    %v1040 = vld [vmem:[%s1038 + $0x8] sm:$0xff]
    %v1041 = vstv %s1033
    %vm1042 = vcmp.lt.s32.totalorder %v932, %v1041
    %v1043 = vsel %vm1042, 1, 0
    %vm1044 = vcmp.eq.s32.totalorder %v1043, 1
    %v1045 = vsel %vm1044, %v1039, -1e+30
    %v1046 = vsel %vm1044, %v1040, -1e+30
    %v1047 = vrot.slane %v1045, 4
    %v1048 = vmax.f32 %v1045, %v1047
    %v1049 = vrot.slane %v1048, 2
    %v1050 = vmax.f32 %v1048, %v1049
    %v1051 = vrot.slane %v1050, 1
    %v1052 = vmax.f32 %v1050, %v1051
    %v1053 = vrot.slane %v1046, 4
    %v1054 = vmax.f32 %v1046, %v1053
    %v1055 = vrot.slane %v1054, 2
    %v1056 = vmax.f32 %v1054, %v1055
    %v1057 = vrot.slane %v1056, 1
    %v1058 = vmax.f32 %v1056, %v1057
    %v1061 = vcombine.low %v1052, %v1058
    %v1063 = vunpack.c.l.s4 1966171168
    %v1064 = vunpack.c.0.s8 %v1063
    %v1065 = vlaneseq
    %v1066 = vshrl.u32 %v1065, 7
    %v1067 = vsub.s32 %v1064, %v1066
    %v1068 = vrot.slane %v1061, %v1067
    %v1070 = vunpack.c.l.s4 1966171168
    %v1071 = vunpack.c.0.s8 %v1070
    %v1072 = vlaneseq
    %v1073 = vshrl.u32 %v1072, 7
    %v1074 = vsub.s32 %v1071, %v1073
    %v1075 = vrot.slane %v1068, %v1074
    %s1077 = scalar_lea.vmem [#allocation3], 2
    %1078 = vst.msk [vmem:[%s1077] ss:$8 sm:$0x3] %vm981, %v1075
    %1079 = vst.msk [vmem:[%s1077] ss:$8 sm:$0x0] %vm981, %v1075
    %s1080 = sld [smem:[#allocation4 + $0x3]]
    %s1081 = sld [smem:[#allocation9 + $0x3]]
    %s1082 = sshra.s32 %s1080, 3
    %s1083 = sand.u32 %s1080, 7
    %s1084 = smul.u32 %s1082, 2
    %s1085 = smul.addr %s1084, 8
    %s1086 = scalar_lea.vmem [#allocation2], %s1085
    %v1087 = vld [vmem:[%s1086] sm:$0xff]
    %v1088 = vld [vmem:[%s1086 + $0x8] sm:$0xff]
    %v1089 = vstv %s1081
    %vm1090 = vcmp.lt.s32.totalorder %v932, %v1089
    %v1091 = vsel %vm1090, 1, 0
    %vm1092 = vcmp.eq.s32.totalorder %v1091, 1
    %v1093 = vsel %vm1092, %v1087, -1e+30
    %v1094 = vsel %vm1092, %v1088, -1e+30
    %v1095 = vrot.slane %v1093, 4
    %v1096 = vmax.f32 %v1093, %v1095
    %v1097 = vrot.slane %v1096, 2
    %v1098 = vmax.f32 %v1096, %v1097
    %v1099 = vrot.slane %v1098, 1
    %v1100 = vmax.f32 %v1098, %v1099
    %v1101 = vrot.slane %v1094, 4
    %v1102 = vmax.f32 %v1094, %v1101
    %v1103 = vrot.slane %v1102, 2
    %v1104 = vmax.f32 %v1102, %v1103
    %v1105 = vrot.slane %v1104, 1
    %v1106 = vmax.f32 %v1104, %v1105
    %v1109 = vcombine.low %v1100, %v1106
    %v1111 = vunpack.c.l.s4 1966171168
    %v1112 = vunpack.c.0.s8 %v1111
    %v1113 = vlaneseq
    %v1114 = vshrl.u32 %v1113, 7
    %v1115 = vsub.s32 %v1112, %v1114
    %v1116 = vrot.slane %v1109, %v1115
    %v1118 = vunpack.c.l.s4 1966171168
    %v1119 = vunpack.c.0.s8 %v1118
    %v1120 = vlaneseq
    %v1121 = vshrl.u32 %v1120, 7
    %v1122 = vsub.s32 %v1119, %v1121
    %v1123 = vrot.slane %v1116, %v1122
    %s1125 = scalar_lea.vmem [#allocation3], 3
    %1126 = vst.msk [vmem:[%s1125] ss:$8 sm:$0x3] %vm981, %v1123
    %1127 = vst.msk [vmem:[%s1125] ss:$8 sm:$0x0] %vm981, %v1123
    %v1128 = vld [vmem:[#allocation17] sm:$0xff]
    %v1129 = vld [vmem:[#allocation17 + $0x8] sm:$0xff]
    %v1130 = vld [vmem:[#allocation17 + $0x10] sm:$0xff]
    %v1131 = vld [vmem:[#allocation17 + $0x18] sm:$0xff]
    %v1132 = vld [vmem:[#allocation17 + $0x20] sm:$0xff]
    %v1133 = vld [vmem:[#allocation17 + $0x28] sm:$0xff]
    %v1134 = vld [vmem:[#allocation17 + $0x30] sm:$0xff]
    %v1135 = vld [vmem:[#allocation17 + $0x38] sm:$0xff]
    %v1136 = vld [vmem:[#allocation17 + $0x40] sm:$0xff]
    %v1137 = vld [vmem:[#allocation17 + $0x48] sm:$0xff]
    %v1138 = vld [vmem:[#allocation17 + $0x50] sm:$0xff]
    %v1139 = vld [vmem:[#allocation17 + $0x58] sm:$0xff]
    %v1140 = vld [vmem:[#allocation17 + $0x60] sm:$0xff]
    %v1141 = vld [vmem:[#allocation17 + $0x68] sm:$0xff]
    %v1142 = vld [vmem:[#allocation17 + $0x70] sm:$0xff]
    %v1143 = vld [vmem:[#allocation17 + $0x78] sm:$0xff]
    %v1144 = vld [vmem:[#allocation17 + $0x80] sm:$0xff]
    %v1145 = vld [vmem:[#allocation17 + $0x88] sm:$0xff]
    %v1146 = vld [vmem:[#allocation17 + $0x90] sm:$0xff]
    %v1147 = vld [vmem:[#allocation17 + $0x98] sm:$0xff]
    %v1148 = vld [vmem:[#allocation17 + $0xa0] sm:$0xff]
    %v1149 = vld [vmem:[#allocation17 + $0xa8] sm:$0xff]
    %v1150 = vld [vmem:[#allocation17 + $0xb0] sm:$0xff]
    %v1151 = vld [vmem:[#allocation17 + $0xb8] sm:$0xff]
    %v1152 = vld [vmem:[#allocation17 + $0xc0] sm:$0xff]
    %v1153 = vld [vmem:[#allocation17 + $0xc8] sm:$0xff]
    %v1154 = vld [vmem:[#allocation17 + $0xd0] sm:$0xff]
    %v1155 = vld [vmem:[#allocation17 + $0xd8] sm:$0xff]
    %v1156 = vld [vmem:[#allocation17 + $0xe0] sm:$0xff]
    %v1157 = vld [vmem:[#allocation17 + $0xe8] sm:$0xff]
    %v1158 = vld [vmem:[#allocation17 + $0xf0] sm:$0xff]
    %v1159 = vld [vmem:[#allocation17 + $0xf8] sm:$0xff]
    %v1160 = vld [vmem:[#allocation3] sm:$0xff]
    %v1161 = vld [vmem:[#allocation3 + $0x8] sm:$0xff]
    %v1162 = vld [vmem:[#allocation19] sm:$0xff]
    %v1163 = vld [vmem:[#allocation19 + $0x8] sm:$0xff]
    %v1164 = vld [vmem:[#allocation19 + $0x10] sm:$0xff]
    %v1165 = vld [vmem:[#allocation19 + $0x18] sm:$0xff]
    %v1166 = vld [vmem:[#allocation19 + $0x20] sm:$0xff]
    %v1167 = vld [vmem:[#allocation19 + $0x28] sm:$0xff]
    %v1168 = vld [vmem:[#allocation19 + $0x30] sm:$0xff]
    %v1169 = vld [vmem:[#allocation19 + $0x38] sm:$0xff]
    %v1170 = vld [vmem:[#allocation19 + $0x40] sm:$0xff]
    %v1171 = vld [vmem:[#allocation19 + $0x48] sm:$0xff]
    %v1172 = vld [vmem:[#allocation19 + $0x50] sm:$0xff]
    %v1173 = vld [vmem:[#allocation19 + $0x58] sm:$0xff]
    %v1174 = vld [vmem:[#allocation19 + $0x60] sm:$0xff]
    %v1175 = vld [vmem:[#allocation19 + $0x68] sm:$0xff]
    %v1176 = vld [vmem:[#allocation19 + $0x70] sm:$0xff]
    %v1177 = vld [vmem:[#allocation19 + $0x78] sm:$0xff]
    %v1178 = vld [vmem:[#allocation19 + $0x80] sm:$0xff]
    %v1179 = vld [vmem:[#allocation19 + $0x88] sm:$0xff]
    %v1180 = vld [vmem:[#allocation19 + $0x90] sm:$0xff]
    %v1181 = vld [vmem:[#allocation19 + $0x98] sm:$0xff]
    %v1182 = vld [vmem:[#allocation19 + $0xa0] sm:$0xff]
    %v1183 = vld [vmem:[#allocation19 + $0xa8] sm:$0xff]
    %v1184 = vld [vmem:[#allocation19 + $0xb0] sm:$0xff]
    %v1185 = vld [vmem:[#allocation19 + $0xb8] sm:$0xff]
    %v1186 = vld [vmem:[#allocation19 + $0xc0] sm:$0xff]
    %v1187 = vld [vmem:[#allocation19 + $0xc8] sm:$0xff]
    %v1188 = vld [vmem:[#allocation19 + $0xd0] sm:$0xff]
    %v1189 = vld [vmem:[#allocation19 + $0xd8] sm:$0xff]
    %v1190 = vld [vmem:[#allocation19 + $0xe0] sm:$0xff]
    %v1191 = vld [vmem:[#allocation19 + $0xe8] sm:$0xff]
    %v1192 = vld [vmem:[#allocation19 + $0xf0] sm:$0xff]
    %v1193 = vld [vmem:[#allocation19 + $0xf8] sm:$0xff]
    %1194 = vmatprep.subr.mxu0 0.0
    %1195 = vmatpush1.msra.mxu0 %v1162
    %1196 = vmatprep.subr.mxu0 0.0
    %1197 = vmatpush1.msra.mxu0 %v1163
    %1198 = vmatprep.subr.mxu0 0.0
    %1199 = vmatpush1.msra.mxu0 %v1164
    %1200 = vmatprep.subr.mxu0 0.0
    %1201 = vmatpush1.msra.mxu0 %v1165
    %1202 = vmatprep.subr.mxu0 0.0
    %1203 = vmatpush1.msra.mxu0 %v1166
    %1204 = vmatprep.subr.mxu0 0.0
    %1205 = vmatpush1.msra.mxu0 %v1167
    %1206 = vmatprep.subr.mxu0 0.0
    %1207 = vmatpush1.msra.mxu0 %v1168
    %1208 = vmatprep.subr.mxu0 0.0
    %1209 = vmatpush1.msra.mxu0 %v1169
    %1210 = vmatprep.subr.mxu0 0.0
    %1211 = vmatpush1.msra.mxu0 %v1170
    %1212 = vmatprep.subr.mxu0 0.0
    %1213 = vmatpush1.msra.mxu0 %v1171
    %1214 = vmatprep.subr.mxu0 0.0
    %1215 = vmatpush1.msra.mxu0 %v1172
    %1216 = vmatprep.subr.mxu0 0.0
    %1217 = vmatpush1.msra.mxu0 %v1173
    %1218 = vmatprep.subr.mxu0 0.0
    %1219 = vmatpush1.msra.mxu0 %v1174
    %1220 = vmatprep.subr.mxu0 0.0
    %1221 = vmatpush1.msra.mxu0 %v1175
    %1222 = vmatprep.subr.mxu0 0.0
    %1223 = vmatpush1.msra.mxu0 %v1176
    %1224 = vmatprep.subr.mxu0 0.0
    %1225 = vmatpush1.msra.mxu0 %v1177
    %1226 = vmatprep.subr.mxu0 0.0
    %1227 = vmatpush1.msra.mxu0 %v1178
    %1228 = vmatprep.subr.mxu0 0.0
    %1229 = vmatpush1.msra.mxu0 %v1179
    %1230 = vmatprep.subr.mxu0 0.0
    %1231 = vmatpush1.msra.mxu0 %v1180
    %1232 = vmatprep.subr.mxu0 0.0
    %1233 = vmatpush1.msra.mxu0 %v1181
    %1234 = vmatprep.subr.mxu0 0.0
    %1235 = vmatpush1.msra.mxu0 %v1182
    %1236 = vmatprep.subr.mxu0 0.0
    %1237 = vmatpush1.msra.mxu0 %v1183
    %1238 = vmatprep.subr.mxu0 0.0
    %1239 = vmatpush1.msra.mxu0 %v1184
    %1240 = vmatprep.subr.mxu0 0.0
    %1241 = vmatpush1.msra.mxu0 %v1185
    %1242 = vmatprep.subr.mxu0 0.0
    %1243 = vmatpush1.msra.mxu0 %v1186
    %1244 = vmatprep.subr.mxu0 0.0
    %1245 = vmatpush1.msra.mxu0 %v1187
    %1246 = vmatprep.subr.mxu0 0.0
    %1247 = vmatpush1.msra.mxu0 %v1188
    %1248 = vmatprep.subr.mxu0 0.0
    %1249 = vmatpush1.msra.mxu0 %v1189
    %1250 = vmatprep.subr.mxu0 0.0
    %1251 = vmatpush1.msra.mxu0 %v1190
    %1252 = vmatprep.subr.mxu0 0.0
    %1253 = vmatpush1.msra.mxu0 %v1191
    %1254 = vmatprep.subr.mxu0 0.0
    %1255 = vmatpush1.msra.mxu0 %v1192
    %1256 = vmatprep.subr.mxu0 0.0
    %1257 = vmatpush1.msra.mxu0 %v1193
    %1258 = vmatprep.mubr.f32.mxu0 %v1161
    %1259 = vmatmul.mubr.f32.gmra.mrb[0].mxu0 %v1160
    %v1260 = vpop.f32.mrb[0].mxu0
    %v1261 = vadd.f32 0.0, %v1260
    %v1262 = vpop.f32.mrb[0].mxu0
    %1263 = vdwg.mxu0
    %1264 = vmatprep.subr.mxu0 0.0
    %1265 = vmatpush1.msra.mxu0 %v1128
    %1266 = vmatprep.subr.mxu0 0.0
    %1267 = vmatpush1.msra.mxu0 %v1129
    %1268 = vmatprep.subr.mxu0 0.0
    %1269 = vmatpush1.msra.mxu0 %v1130
    %1270 = vmatprep.subr.mxu0 0.0
    %1271 = vmatpush1.msra.mxu0 %v1131
    %1272 = vmatprep.subr.mxu0 0.0
    %1273 = vmatpush1.msra.mxu0 %v1132
    %1274 = vmatprep.subr.mxu0 0.0
    %1275 = vmatpush1.msra.mxu0 %v1133
    %1276 = vmatprep.subr.mxu0 0.0
    %1277 = vmatpush1.msra.mxu0 %v1134
    %1278 = vmatprep.subr.mxu0 0.0
    %1279 = vmatpush1.msra.mxu0 %v1135
    %1280 = vmatprep.subr.mxu0 0.0
    %1281 = vmatpush1.msra.mxu0 %v1136
    %1282 = vmatprep.subr.mxu0 0.0
    %1283 = vmatpush1.msra.mxu0 %v1137
    %1284 = vmatprep.subr.mxu0 0.0
    %1285 = vmatpush1.msra.mxu0 %v1138
    %1286 = vmatprep.subr.mxu0 0.0
    %1287 = vmatpush1.msra.mxu0 %v1139
    %1288 = vmatprep.subr.mxu0 0.0
    %1289 = vmatpush1.msra.mxu0 %v1140
    %1290 = vmatprep.subr.mxu0 0.0
    %1291 = vmatpush1.msra.mxu0 %v1141
    %1292 = vmatprep.subr.mxu0 0.0
    %1293 = vmatpush1.msra.mxu0 %v1142
    %1294 = vmatprep.subr.mxu0 0.0
    %1295 = vmatpush1.msra.mxu0 %v1143
    %1296 = vmatprep.subr.mxu0 0.0
    %1297 = vmatpush1.msra.mxu0 %v1144
    %1298 = vmatprep.subr.mxu0 0.0
    %1299 = vmatpush1.msra.mxu0 %v1145
    %1300 = vmatprep.subr.mxu0 0.0
    %1301 = vmatpush1.msra.mxu0 %v1146
    %1302 = vmatprep.subr.mxu0 0.0
    %1303 = vmatpush1.msra.mxu0 %v1147
    %1304 = vmatprep.subr.mxu0 0.0
    %1305 = vmatpush1.msra.mxu0 %v1148
    %1306 = vmatprep.subr.mxu0 0.0
    %1307 = vmatpush1.msra.mxu0 %v1149
    %1308 = vmatprep.subr.mxu0 0.0
    %1309 = vmatpush1.msra.mxu0 %v1150
    %1310 = vmatprep.subr.mxu0 0.0
    %1311 = vmatpush1.msra.mxu0 %v1151
    %1312 = vmatprep.subr.mxu0 0.0
    %1313 = vmatpush1.msra.mxu0 %v1152
    %1314 = vmatprep.subr.mxu0 0.0
    %1315 = vmatpush1.msra.mxu0 %v1153
    %1316 = vmatprep.subr.mxu0 0.0
    %1317 = vmatpush1.msra.mxu0 %v1154
    %1318 = vmatprep.subr.mxu0 0.0
    %1319 = vmatpush1.msra.mxu0 %v1155
    %1320 = vmatprep.subr.mxu0 0.0
    %1321 = vmatpush1.msra.mxu0 %v1156
    %1322 = vmatprep.subr.mxu0 0.0
    %1323 = vmatpush1.msra.mxu0 %v1157
    %1324 = vmatprep.subr.mxu0 0.0
    %1325 = vmatpush1.msra.mxu0 %v1158
    %1326 = vmatprep.subr.mxu0 0.0
    %1327 = vmatpush1.msra.mxu0 %v1159
    %1328 = vmatprep.mubr.f32.mxu0 %v919
    %1329 = vmatmul.mubr.f32.gmra.mrb[0].mxu0 %v917
    %v1330 = vpop.f32.mrb[0].mxu0
    %v1331 = vadd.f32 %v1261, %v1330
    %v1332 = vpop.f32.mrb[0].mxu0
    %1333 = vdwg.mxu0
    %v1334 = vld [vmem:[%s11] sm:$0x1]
    %v1336 = vlaneseq
    %v1337 = vshrl.u32 %v1336, 7
    %v1338 = vsub.s32 0, %v1337
    %v1339 = vrot.slane %v1334, %v1338
    %v1341 = vadd.f32 %v1331, %v1339
    %v1342 = vmax.f32 %v1341, 0.0
    %v1343 = vld [vmem:[#allocation20] sm:$0xff]
    %v1344 = vld [vmem:[#allocation20 + $0x8] sm:$0xff]
    %v1345 = vld [vmem:[#allocation20 + $0x10] sm:$0xff]
    %v1346 = vld [vmem:[#allocation20 + $0x18] sm:$0xff]
    %v1347 = vld [vmem:[#allocation20 + $0x20] sm:$0xff]
    %v1348 = vld [vmem:[#allocation20 + $0x28] sm:$0xff]
    %v1349 = vld [vmem:[#allocation20 + $0x30] sm:$0xff]
    %v1350 = vld [vmem:[#allocation20 + $0x38] sm:$0xff]
    %v1351 = vld [vmem:[#allocation20 + $0x40] sm:$0xff]
    %v1352 = vld [vmem:[#allocation20 + $0x48] sm:$0xff]
    %v1353 = vld [vmem:[#allocation20 + $0x50] sm:$0xff]
    %v1354 = vld [vmem:[#allocation20 + $0x58] sm:$0xff]
    %v1355 = vld [vmem:[#allocation20 + $0x60] sm:$0xff]
    %v1356 = vld [vmem:[#allocation20 + $0x68] sm:$0xff]
    %v1357 = vld [vmem:[#allocation20 + $0x70] sm:$0xff]
    %v1358 = vld [vmem:[#allocation20 + $0x78] sm:$0xff]
    %v1359 = vld [vmem:[%s13] sm:$0x1]
    %v1361 = vlaneseq
    %v1362 = vshrl.u32 %v1361, 7
    %v1363 = vsub.s32 0, %v1362
    %v1364 = vrot.slane %v1359, %v1363
    %1366 = vmatprep.subr.mxu0 0.0
    %1367 = vmatpush1.msra.mxu0 %v1343
    %1368 = vmatprep.subr.mxu0 0.0
    %1369 = vmatpush1.msra.mxu0 %v1344
    %1370 = vmatprep.subr.mxu0 0.0
    %1371 = vmatpush1.msra.mxu0 %v1345
    %1372 = vmatprep.subr.mxu0 0.0
    %1373 = vmatpush1.msra.mxu0 %v1346
    %1374 = vmatprep.subr.mxu0 0.0
    %1375 = vmatpush1.msra.mxu0 %v1347
    %1376 = vmatprep.subr.mxu0 0.0
    %1377 = vmatpush1.msra.mxu0 %v1348
    %1378 = vmatprep.subr.mxu0 0.0
    %1379 = vmatpush1.msra.mxu0 %v1349
    %1380 = vmatprep.subr.mxu0 0.0
    %1381 = vmatpush1.msra.mxu0 %v1350
    %1382 = vmatprep.subr.mxu0 0.0
    %1383 = vmatpush1.msra.mxu0 %v1351
    %1384 = vmatprep.subr.mxu0 0.0
    %1385 = vmatpush1.msra.mxu0 %v1352
    %1386 = vmatprep.subr.mxu0 0.0
    %1387 = vmatpush1.msra.mxu0 %v1353
    %1388 = vmatprep.subr.mxu0 0.0
    %1389 = vmatpush1.msra.mxu0 %v1354
    %1390 = vmatprep.subr.mxu0 0.0
    %1391 = vmatpush1.msra.mxu0 %v1355
    %1392 = vmatprep.subr.mxu0 0.0
    %1393 = vmatpush1.msra.mxu0 %v1356
    %1394 = vmatprep.subr.mxu0 0.0
    %1395 = vmatpush1.msra.mxu0 %v1357
    %1396 = vmatprep.subr.mxu0 0.0
    %1397 = vmatpush1.msra.mxu0 %v1358
    %1398 = vmatprep.subr.mxu0 0.0
    %1399 = vmatpush1.msra.mxu0 0.0
    %1400 = vmatprep.subr.mxu0 0.0
    %1401 = vmatpush1.msra.mxu0 0.0
    %1402 = vmatprep.subr.mxu0 0.0
    %1403 = vmatpush1.msra.mxu0 0.0
    %1404 = vmatprep.subr.mxu0 0.0
    %1405 = vmatpush1.msra.mxu0 0.0
    %1406 = vmatprep.subr.mxu0 0.0
    %1407 = vmatpush1.msra.mxu0 0.0
    %1408 = vmatprep.subr.mxu0 0.0
    %1409 = vmatpush1.msra.mxu0 0.0
    %1410 = vmatprep.subr.mxu0 0.0
    %1411 = vmatpush1.msra.mxu0 0.0
    %1412 = vmatprep.subr.mxu0 0.0
    %1413 = vmatpush1.msra.mxu0 0.0
    %1414 = vmatprep.subr.mxu0 0.0
    %1415 = vmatpush1.msra.mxu0 0.0
    %1416 = vmatprep.subr.mxu0 0.0
    %1417 = vmatpush1.msra.mxu0 0.0
    %1418 = vmatprep.subr.mxu0 0.0
    %1419 = vmatpush1.msra.mxu0 0.0
    %1420 = vmatprep.subr.mxu0 0.0
    %1421 = vmatpush1.msra.mxu0 0.0
    %1422 = vmatprep.subr.mxu0 0.0
    %1423 = vmatpush1.msra.mxu0 0.0
    %1424 = vmatprep.subr.mxu0 0.0
    %1425 = vmatpush1.msra.mxu0 0.0
    %1426 = vmatprep.subr.mxu0 0.0
    %1427 = vmatpush1.msra.mxu0 0.0
    %1428 = vmatprep.subr.mxu0 0.0
    %1429 = vmatpush1.msra.mxu0 0.0
    %1430 = vmatprep.mubr.f32.mxu0 0.0
    %1431 = vmatmul.mubr.f32.gmra.mrb[0].mxu0 %v1342
    %v1432 = vpop.f32.mrb[0].mxu0
    %v1433 = vadd.f32 %v1364, %v1432
    %v1434 = vpop.f32.mrb[0].mxu0
    %1435 = vdwg.mxu0
    %1436 = vmax.xlane.f32.xlu0 %v1433
    %v1437 = vpop.xlane.xlu0 %1436
    %v1438 = vsub.f32 %v1433, %v1437
    %v1439 = vmul.f32 %v1438, 1.442695
    %v1440 = vpow.pop %v1439
    %1441 = vadd.xlane.f32.xlu0 %v1440
    %v1442 = vpop.xlane.xlu0 %1441
    %v1443 = vlog2.pop %v1442
    %v1444 = vmul.f32 %v1443, 0.6931472
    %v1445 = vsub.f32 %v1438, %v1444
    %1446 = vst [vmem:[#allocation22] sm:$0xff] %v1445
    // Predicated region
    $region98: #{tpu_custom_call.1} parent=1 // pred_check
      _
    $region99: #{tpu_custom_call.1} parent=1 // pred_check_branch
      %1448 = sbr.rel (0) target = $region101
    $region100: #{tpu_custom_call.1} parent=1 // pred_region
      %s1450 = ssub.s32 128, 128
      %1451 = vsyncadd [#allocation6], %s1450
      %s1453 = sshll.u32 [#allocation22], 4
      %s1454 = int_to_ptr.vmem [resolvable:$true] %s1453
      %1456 = dma.vmem_to_hbm [thread:$0]  %s1454, 128, %s14, [#allocation6]
    $region101: #{tpu_custom_call.1} parent=1 // pred_fallthru
      _
    // Predicated region
    $region102: #{tpu_custom_call.1} parent=1 // pred_check
      _
    $region103: #{tpu_custom_call.1} parent=1 // pred_check_branch
      %1458 = sbr.rel (0) target = $region105
    $region104: #{tpu_custom_call.1} parent=1 // pred_region
      %1459 = dma.done [#allocation6], 128
    $region105: #{tpu_custom_call.1} parent=1 // pred_fallthru
      _
    %1460 = vsyncpa [#allocation5], 1
    %1461 = vsyncpa [#allocation12], 1
    %1462 = vsyncpa [#allocation15], 1
    %1463 = vsyncpa [#allocation18], 1
    %1464 = vsyncpa [#allocation21], 1
    %1465 = vsyncpa [#allocation6], 1
    %1466 = vsyncpa [#allocation7], 1
    %1467 = vsyncpa [#allocation8], 1

</llo_original>
